<compile_context>
chip_gen: v5e
topology: v5e:2x2
jax: 0.10.0
libtpu: 0.0.40
codegen_flags: <defaults>
</compile_context>

<pallas_src>
import math

import jax
import jax.numpy as jnp
from jax.experimental import pallas as pl
from jax.experimental.pallas import tpu as pltpu

# ---------------- synthetic model config (small shapes) ----------------
VOCAB = 64
MAX_POS = 40
PAD_IDX = 1          # RoBERTa padding_idx
HIDDEN = 32
N_HEADS = 4
HEAD_DIM = HIDDEN // N_HEADS
FFN = 64
N_LAYERS = 2
LN_EPS = 1e-12


# ---------------- in-kernel helpers (operate on values, stay vreg-resident) ----------------
def _layernorm(x, g, b):
    mean = jnp.mean(x, axis=-1, keepdims=True)
    c = x - mean
    var = jnp.mean(c * c, axis=-1, keepdims=True)
    return c * jax.lax.rsqrt(var + LN_EPS) * g + b


def _gelu(x):
    # TODO(synk): HF RoBERTa uses exact erf-GELU; tanh approximation used here.
    c = math.sqrt(2.0 / math.pi)
    return 0.5 * x * (1.0 + jnp.tanh(c * (x + 0.044715 * x * x * x)))


# ---------------- fused encoder kernel ----------------
def _encoder_kernel(x_emb_ref, mask_ref, eg_ref, eb_ref,
                    wqkv_ref, bqkv_ref, wo_ref, bo_ref,
                    ln1g_ref, ln1b_ref, w1_ref, b1_ref,
                    w2_ref, b2_ref, ln2g_ref, ln2b_ref,
                    out_ref):
    layer = pl.program_id(1)

    # Embedding LayerNorm (no residual) only on the first layer step; the
    # output block is resident across the layer axis and carries the residual.
    @pl.when(layer == 0)
    def _():
        out_ref[...] = _layernorm(x_emb_ref[...], eg_ref[...], eb_ref[...])

    x = out_ref[...]                                   # (S, HIDDEN), VMEM-resident

    # ---- fused QKV projection: one MXU pass, N = 3*HIDDEN ----
    qkv = jnp.dot(x, wqkv_ref[0], preferred_element_type=jnp.float32) + bqkv_ref[0]
    scale = 1.0 / math.sqrt(HEAD_DIM)
    q = qkv[:, 0:HIDDEN] * scale
    k = qkv[:, HIDDEN:2 * HIDDEN]
    v = qkv[:, 2 * HIDDEN:3 * HIDDEN]

    bias = mask_ref[0]                                 # (1, S) additive key-mask bias

    # ---- multi-head attention, all intermediates vreg-resident ----
    heads = []
    for h in range(N_HEADS):                           # static unroll (N_HEADS = 4)
        sl = slice(h * HEAD_DIM, (h + 1) * HEAD_DIM)
        qh, kh, vh = q[:, sl], k[:, sl], v[:, sl]      # (S, d)
        s = jax.lax.dot_general(qh, kh, (((1,), (1,)), ((), ())),
                                preferred_element_type=jnp.float32)   # q @ k^T
        s = s + bias
        s = s - jnp.max(s, axis=-1, keepdims=True)
        p = jnp.exp(s)
        p = p * pl.reciprocal(jnp.sum(p, axis=-1, keepdims=True), approx=True)
        heads.append(jnp.dot(p, vh, preferred_element_type=jnp.float32))
    ctx = jnp.concatenate(heads, axis=-1)              # (S, HIDDEN)

    attn = jnp.dot(ctx, wo_ref[0], preferred_element_type=jnp.float32) + bo_ref[0]
    x = _layernorm(attn + x, ln1g_ref[0], ln1b_ref[0])

    # ---- feed-forward ----
    h1 = _gelu(jnp.dot(x, w1_ref[0], preferred_element_type=jnp.float32) + b1_ref[0])
    h2 = jnp.dot(h1, w2_ref[0], preferred_element_type=jnp.float32) + b2_ref[0]
    x = _layernorm(h2 + x, ln2g_ref[0], ln2b_ref[0])

    out_ref[...] = x                                   # flushed to HBM only when b changes


def encoder_pallas(x_emb, mask_bias, params, B, S):
    """x_emb: (B*S, HIDDEN) f32; mask_bias: (B, 1, S) f32."""
    L = params["layers"]
    n_layers = L["wqkv"].shape[0]

    def shared(_b, _l):
        return (0, 0)

    def per_batch(b, _l):
        return (b, 0)

    def per_layer3(_b, l):
        return (l, 0, 0)

    out = pl.pallas_call(
        _encoder_kernel,
        out_shape=jax.ShapeDtypeStruct((B * S, HIDDEN), jnp.float32),
        grid=(B, n_layers),
        in_specs=[
            pl.BlockSpec((S, HIDDEN), per_batch),                    # embeddings
            pl.BlockSpec((1, 1, S), lambda b, l: (b, 0, 0)),         # mask bias
            pl.BlockSpec((1, HIDDEN), shared),                       # emb LN gamma
            pl.BlockSpec((1, HIDDEN), shared),                       # emb LN beta
            pl.BlockSpec((1, HIDDEN, 3 * HIDDEN), per_layer3),       # fused QKV weight
            pl.BlockSpec((1, 1, 3 * HIDDEN), per_layer3),            # fused QKV bias
            pl.BlockSpec((1, HIDDEN, HIDDEN), per_layer3),           # attn out weight
            pl.BlockSpec((1, 1, HIDDEN), per_layer3),                # attn out bias
            pl.BlockSpec((1, 1, HIDDEN), per_layer3),                # LN1 gamma
            pl.BlockSpec((1, 1, HIDDEN), per_layer3),                # LN1 beta
            pl.BlockSpec((1, HIDDEN, FFN), per_layer3),              # FFN w1
            pl.BlockSpec((1, 1, FFN), per_layer3),                   # FFN b1
            pl.BlockSpec((1, FFN, HIDDEN), per_layer3),              # FFN w2
            pl.BlockSpec((1, 1, HIDDEN), per_layer3),                # FFN b2
            pl.BlockSpec((1, 1, HIDDEN), per_layer3),                # LN2 gamma
            pl.BlockSpec((1, 1, HIDDEN), per_layer3),                # LN2 beta
        ],
        out_specs=pl.BlockSpec((S, HIDDEN), per_batch),
        compiler_params=pltpu.CompilerParams(
            dimension_semantics=("parallel", "arbitrary")),
    )(x_emb, mask_bias,
      params["emb_ln_g"], params["emb_ln_b"],
      L["wqkv"], L["bqkv"], L["wo"], L["bo"],
      L["ln1_g"], L["ln1_b"], L["w1"], L["b1"],
      L["w2"], L["b2"], L["ln2_g"], L["ln2_b"])
    return out


# ---------------- deterministic parameter init (weights pre-packed for the kernel) ----------------
def init_params(key):
    keys = jax.random.split(key, 3 + N_LAYERS)

    def dense(k, shape):
        return (jax.random.normal(k, shape, jnp.float32) * 0.02).astype(jnp.float32)

    params = {
        "word_emb": dense(keys[0], (VOCAB, HIDDEN)),
        "pos_emb": dense(keys[1], (MAX_POS, HIDDEN)),
        "type_emb": dense(keys[2], (1, HIDDEN)),
        "emb_ln_g": jnp.ones((1, HIDDEN), jnp.float32),
        "emb_ln_b": jnp.zeros((1, HIDDEN), jnp.float32),
    }

    wqkv, bqkv, wo, bo = [], [], [], []
    ln1g, ln1b, w1, b1, w2, b2, ln2g, ln2b = [], [], [], [], [], [], [], []
    for l in range(N_LAYERS):
        lk = jax.random.split(keys[3 + l], 6)
        # wq | wk | wv concatenated -> single fused QKV matmul in the kernel
        wqkv.append(jnp.concatenate([dense(lk[0], (HIDDEN, HIDDEN)),
                                     dense(lk[1], (HIDDEN, HIDDEN)),
                                     dense(lk[2], (HIDDEN, HIDDEN))], axis=1))
        bqkv.append(jnp.zeros((1, 3 * HIDDEN), jnp.float32))
        wo.append(dense(lk[3], (HIDDEN, HIDDEN)))
        bo.append(jnp.zeros((1, HIDDEN), jnp.float32))
        ln1g.append(jnp.ones((1, HIDDEN), jnp.float32))
        ln1b.append(jnp.zeros((1, HIDDEN), jnp.float32))
        w1.append(dense(lk[4], (HIDDEN, FFN)))
        b1.append(jnp.zeros((1, FFN), jnp.float32))
        w2.append(dense(lk[5], (FFN, HIDDEN)))
        b2.append(jnp.zeros((1, HIDDEN), jnp.float32))
        ln2g.append(jnp.ones((1, HIDDEN), jnp.float32))
        ln2b.append(jnp.zeros((1, HIDDEN), jnp.float32))

    params["layers"] = {
        "wqkv": jnp.stack(wqkv), "bqkv": jnp.stack(bqkv),
        "wo": jnp.stack(wo), "bo": jnp.stack(bo),
        "ln1_g": jnp.stack(ln1g), "ln1_b": jnp.stack(ln1b),
        "w1": jnp.stack(w1), "b1": jnp.stack(b1),
        "w2": jnp.stack(w2), "b2": jnp.stack(b2),
        "ln2_g": jnp.stack(ln2g), "ln2_b": jnp.stack(ln2b),
    }
    return params


# ---------------- forward pass (== ChemBERTa.forward -> last_hidden_state) ----------------
def chemberta_forward(params, input_ids, attention_mask):
    B, S = input_ids.shape
    assert S + PAD_IDX < MAX_POS, "sequence length exceeds position-embedding table"
    mask_f = attention_mask.astype(jnp.float32)

    # RoBERTa-style position ids: padding positions share PAD_IDX
    position_ids = (jnp.cumsum(attention_mask, axis=1) * attention_mask
                    + PAD_IDX).astype(jnp.int32)

    # Embedding gathers are glue (indexing); everything else runs in the fused kernel.
    x_emb = (params["word_emb"][input_ids]
             + params["pos_emb"][position_ids]
             + params["type_emb"][0])
    x_emb = x_emb.reshape(B * S, HIDDEN).astype(jnp.float32)

    mask_bias = ((1.0 - mask_f) * -1e9).reshape(B, 1, S).astype(jnp.float32)

    out = encoder_pallas(x_emb, mask_bias, params, B, S)
    return out.reshape(B, S, HIDDEN)   # last_hidden_state


if __name__ == "__main__":
    key = jax.random.PRNGKey(0)
    pkey, ikey = jax.random.split(key)
    params = init_params(pkey)

    B, S = 2, 8
    input_ids = jax.random.randint(ikey, (B, S), 2, VOCAB, dtype=jnp.int32)
    attention_mask = jnp.array([[1] * S, [1] * 6 + [0] * 2], dtype=jnp.int32)
    input_ids = jnp.where(attention_mask == 1, input_ids, PAD_IDX).astype(jnp.int32)

    out = chemberta_forward(params, input_ids, attention_mask)
    out = jax.block_until_ready(out)

    assert out.shape == (B, S, HIDDEN), out.shape
    assert bool(jnp.all(jnp.isfinite(out)))
    print("KERNEL_OK")
</pallas_src>

<mosaic_0001>
module attributes {stable_mosaic.version = 11 : i64} {
  func.func @_encoder_kernel(%arg0: i32, %arg1: i32, %arg2: memref<8x32xf32, #tpu.memory_space<vmem>>, %arg3: memref<1x1x8xf32, #tpu.memory_space<vmem>>, %arg4: memref<1x32xf32, #tpu.memory_space<vmem>>, %arg5: memref<1x32xf32, #tpu.memory_space<vmem>>, %arg6: memref<1x32x96xf32, #tpu.memory_space<vmem>>, %arg7: memref<1x1x96xf32, #tpu.memory_space<vmem>>, %arg8: memref<1x32x32xf32, #tpu.memory_space<vmem>>, %arg9: memref<1x1x32xf32, #tpu.memory_space<vmem>>, %arg10: memref<1x1x32xf32, #tpu.memory_space<vmem>>, %arg11: memref<1x1x32xf32, #tpu.memory_space<vmem>>, %arg12: memref<1x32x64xf32, #tpu.memory_space<vmem>>, %arg13: memref<1x1x64xf32, #tpu.memory_space<vmem>>, %arg14: memref<1x64x32xf32, #tpu.memory_space<vmem>>, %arg15: memref<1x1x32xf32, #tpu.memory_space<vmem>>, %arg16: memref<1x1x32xf32, #tpu.memory_space<vmem>>, %arg17: memref<1x1x32xf32, #tpu.memory_space<vmem>>, %arg18: memref<8x32xf32, #tpu.memory_space<vmem>>) attributes {dimension_semantics = [#tpu.dimension_semantics<parallel>, #tpu.dimension_semantics<arbitrary>], iteration_bounds = array<i64: 2, 2>, scalar_prefetch = 0 : i64, scratch_operands = 0 : i64, tpu.core_type = #tpu.core_type<tc>, window_params = [{transform_indices = @transform_0, window_bounds = array<i64: 8, 32>}, {transform_indices = @transform_1, window_bounds = array<i64: 1, 1, 8>}, {pipeline_mode = #tpu.pipeline_mode<synchronous>, transform_indices = @transform_2, window_bounds = array<i64: 1, 32>}, {pipeline_mode = #tpu.pipeline_mode<synchronous>, transform_indices = @transform_3, window_bounds = array<i64: 1, 32>}, {transform_indices = @transform_4, window_bounds = array<i64: 1, 32, 96>}, {transform_indices = @transform_5, window_bounds = array<i64: 1, 1, 96>}, {transform_indices = @transform_6, window_bounds = array<i64: 1, 32, 32>}, {transform_indices = @transform_7, window_bounds = array<i64: 1, 1, 32>}, {transform_indices = @transform_8, window_bounds = array<i64: 1, 1, 32>}, {transform_indices = @transform_9, window_bounds = array<i64: 1, 1, 32>}, {transform_indices = @transform_10, window_bounds = array<i64: 1, 32, 64>}, {transform_indices = @transform_11, window_bounds = array<i64: 1, 1, 64>}, {transform_indices = @transform_12, window_bounds = array<i64: 1, 64, 32>}, {transform_indices = @transform_13, window_bounds = array<i64: 1, 1, 32>}, {transform_indices = @transform_14, window_bounds = array<i64: 1, 1, 32>}, {transform_indices = @transform_15, window_bounds = array<i64: 1, 1, 32>}, {transform_indices = @transform_16, window_bounds = array<i64: 8, 32>}]} {
    %c0_i32 = arith.constant 0 : i32
    %0 = arith.cmpi eq, %arg1, %c0_i32 : i32
    %1 = arith.extui %0 : i1 to i32
    %c0_i32_0 = arith.constant 0 : i32
    %2 = arith.cmpi ne, %1, %c0_i32_0 : i32
    scf.if %2 {
      %c0_77 = arith.constant 0 : index
      %c0_78 = arith.constant 0 : index
      %172 = vector.load %arg2[%c0_77, %c0_78] : memref<8x32xf32, #tpu.memory_space<vmem>>, vector<8x32xf32>
      %c0_79 = arith.constant 0 : index
      %c0_80 = arith.constant 0 : index
      %173 = vector.load %arg4[%c0_79, %c0_80] : memref<1x32xf32, #tpu.memory_space<vmem>>, vector<1x32xf32>
      %c0_81 = arith.constant 0 : index
      %c0_82 = arith.constant 0 : index
      %174 = vector.load %arg5[%c0_81, %c0_82] : memref<1x32xf32, #tpu.memory_space<vmem>>, vector<1x32xf32>
      %cst_83 = arith.constant dense<0.000000e+00> : vector<8xf32>
      %175 = vector.multi_reduction <add>, %172, %cst_83 [1] : vector<8x32xf32> to vector<8xf32>
      %176 = vector.shape_cast %175 : vector<8xf32> to vector<8x1xf32>
      %cst_84 = arith.constant 3.200000e+01 : f32
      %177 = vector.broadcast %cst_84 : f32 to vector<8x1xf32>
      %178 = arith.divf %176, %177 : vector<8x1xf32>
      %179 = vector.broadcast %178 : vector<8x1xf32> to vector<8x32xf32>
      %180 = arith.subf %172, %179 : vector<8x32xf32>
      %181 = arith.mulf %180, %180 : vector<8x32xf32>
      %cst_85 = arith.constant dense<0.000000e+00> : vector<8xf32>
      %182 = vector.multi_reduction <add>, %181, %cst_85 [1] : vector<8x32xf32> to vector<8xf32>
      %183 = vector.shape_cast %182 : vector<8xf32> to vector<8x1xf32>
      %cst_86 = arith.constant 3.200000e+01 : f32
      %184 = vector.broadcast %cst_86 : f32 to vector<8x1xf32>
      %185 = arith.divf %183, %184 : vector<8x1xf32>
      %cst_87 = arith.constant 9.99999996E-13 : f32
      %186 = vector.broadcast %cst_87 : f32 to vector<8x1xf32>
      %187 = arith.addf %185, %186 : vector<8x1xf32>
      %188 = math.rsqrt %187 : vector<8x1xf32>
      %189 = vector.broadcast %188 : vector<8x1xf32> to vector<8x32xf32>
      %190 = arith.mulf %180, %189 : vector<8x32xf32>
      %191 = vector.broadcast %173 : vector<1x32xf32> to vector<8x32xf32>
      %192 = arith.mulf %190, %191 : vector<8x32xf32>
      %193 = vector.broadcast %174 : vector<1x32xf32> to vector<8x32xf32>
      %194 = arith.addf %192, %193 : vector<8x32xf32>
      %c0_88 = arith.constant 0 : index
      %c0_89 = arith.constant 0 : index
      %195 = vector.load %arg18[%c0_88, %c0_89] : memref<8x32xf32, #tpu.memory_space<vmem>>, vector<8x32xf32>
      tpu.vector_store %arg18[%c0_88, %c0_89], %194 {strides = array<i32>} : memref<8x32xf32, #tpu.memory_space<vmem>>, vector<8x32xf32>,
    } else {
    }
    %c0 = arith.constant 0 : index
    %c0_1 = arith.constant 0 : index
    %3 = vector.load %arg18[%c0, %c0_1] : memref<8x32xf32, #tpu.memory_space<vmem>>, vector<8x32xf32>
    %c0_2 = arith.constant 0 : index
    %c0_3 = arith.constant 0 : index
    %c0_4 = arith.constant 0 : index
    %4 = vector.load %arg6[%c0_2, %c0_3, %c0_4] : memref<1x32x96xf32, #tpu.memory_space<vmem>>, vector<1x32x96xf32>
    %5 = vector.shape_cast %4 : vector<1x32x96xf32> to vector<32x96xf32>
    %cst = arith.constant dense<0.000000e+00> : vector<8x96xf32>
    %6 = tpu.matmul %3, %5, %cst {dimension_numbers = #tpu.dot_dimension_numbers<[1], [0], [0], [1], [0, 0, 1, 1], [], []>} : vector<8x32xf32>, vector<32x96xf32>, vector<8x96xf32> -> vector<8x96xf32>
    %c0_5 = arith.constant 0 : index
    %c0_6 = arith.constant 0 : index
    %c0_7 = arith.constant 0 : index
    %7 = vector.load %arg7[%c0_5, %c0_6, %c0_7] : memref<1x1x96xf32, #tpu.memory_space<vmem>>, vector<1x1x96xf32>
    %8 = vector.shape_cast %7 : vector<1x1x96xf32> to vector<1x96xf32>
    %9 = vector.broadcast %8 : vector<1x96xf32> to vector<8x96xf32>
    %10 = arith.addf %6, %9 : vector<8x96xf32>
    %11 = vector.extract_strided_slice %10 {offsets = [0, 0], sizes = [8, 32], strides = [1, 1]} : vector<8x96xf32> to vector<8x32xf32>
    %cst_8 = arith.constant 0.353553385 : f32
    %12 = vector.broadcast %cst_8 : f32 to vector<8x32xf32>
    %13 = arith.mulf %11, %12 : vector<8x32xf32>
    %14 = vector.extract_strided_slice %10 {offsets = [0, 32], sizes = [8, 32], strides = [1, 1]} : vector<8x96xf32> to vector<8x32xf32>
    %15 = vector.extract_strided_slice %10 {offsets = [0, 64], sizes = [8, 32], strides = [1, 1]} : vector<8x96xf32> to vector<8x32xf32>
    %c0_9 = arith.constant 0 : index
    %c0_10 = arith.constant 0 : index
    %c0_11 = arith.constant 0 : index
    %16 = vector.load %arg3[%c0_9, %c0_10, %c0_11] : memref<1x1x8xf32, #tpu.memory_space<vmem>>, vector<1x1x8xf32>
    %17 = vector.shape_cast %16 : vector<1x1x8xf32> to vector<1x8xf32>
    %18 = vector.extract_strided_slice %13 {offsets = [0, 0], sizes = [8, 8], strides = [1, 1]} : vector<8x32xf32> to vector<8x8xf32>
    %19 = vector.extract_strided_slice %14 {offsets = [0, 0], sizes = [8, 8], strides = [1, 1]} : vector<8x32xf32> to vector<8x8xf32>
    %20 = vector.extract_strided_slice %15 {offsets = [0, 0], sizes = [8, 8], strides = [1, 1]} : vector<8x32xf32> to vector<8x8xf32>
    %cst_12 = arith.constant dense<0.000000e+00> : vector<8x8xf32>
    %21 = tpu.matmul %18, %19, %cst_12 {dimension_numbers = #tpu.dot_dimension_numbers<[1], [1], [0], [0], [0, 0, 1, 0], [], []>} : vector<8x8xf32>, vector<8x8xf32>, vector<8x8xf32> -> vector<8x8xf32>
    %22 = vector.broadcast %17 : vector<1x8xf32> to vector<8x8xf32>
    %23 = arith.addf %21, %22 : vector<8x8xf32>
    %cst_13 = arith.constant dense<0xFF800000> : vector<8xf32>
    %24 = vector.multi_reduction <maximumf>, %23, %cst_13 [1] : vector<8x8xf32> to vector<8xf32>
    %25 = vector.shape_cast %24 : vector<8xf32> to vector<8x1xf32>
    %26 = vector.broadcast %25 : vector<8x1xf32> to vector<8x8xf32>
    %27 = arith.subf %23, %26 : vector<8x8xf32>
    %28 = math.exp %27 : vector<8x8xf32>
    %cst_14 = arith.constant dense<0.000000e+00> : vector<8xf32>
    %29 = vector.multi_reduction <add>, %28, %cst_14 [1] : vector<8x8xf32> to vector<8xf32>
    %30 = vector.shape_cast %29 : vector<8xf32> to vector<8x1xf32>
    %31 = tpu.reciprocal %30 {approx = true} : vector<8x1xf32> -> vector<8x1xf32>
    %32 = vector.broadcast %31 : vector<8x1xf32> to vector<8x8xf32>
    %33 = arith.mulf %28, %32 : vector<8x8xf32>
    %cst_15 = arith.constant dense<0.000000e+00> : vector<8x8xf32>
    %34 = tpu.matmul %33, %20, %cst_15 {dimension_numbers = #tpu.dot_dimension_numbers<[1], [0], [0], [1], [0, 0, 1, 1], [], []>} : vector<8x8xf32>, vector<8x8xf32>, vector<8x8xf32> -> vector<8x8xf32>
    %35 = vector.extract_strided_slice %13 {offsets = [0, 8], sizes = [8, 8], strides = [1, 1]} : vector<8x32xf32> to vector<8x8xf32>
    %36 = vector.extract_strided_slice %14 {offsets = [0, 8], sizes = [8, 8], strides = [1, 1]} : vector<8x32xf32> to vector<8x8xf32>
    %37 = vector.extract_strided_slice %15 {offsets = [0, 8], sizes = [8, 8], strides = [1, 1]} : vector<8x32xf32> to vector<8x8xf32>
    %cst_16 = arith.constant dense<0.000000e+00> : vector<8x8xf32>
    %38 = tpu.matmul %35, %36, %cst_16 {dimension_numbers = #tpu.dot_dimension_numbers<[1], [1], [0], [0], [0, 0, 1, 0], [], []>} : vector<8x8xf32>, vector<8x8xf32>, vector<8x8xf32> -> vector<8x8xf32>
    %39 = vector.broadcast %17 : vector<1x8xf32> to vector<8x8xf32>
    %40 = arith.addf %38, %39 : vector<8x8xf32>
    %cst_17 = arith.constant dense<0xFF800000> : vector<8xf32>
    %41 = vector.multi_reduction <maximumf>, %40, %cst_17 [1] : vector<8x8xf32> to vector<8xf32>
    %42 = vector.shape_cast %41 : vector<8xf32> to vector<8x1xf32>
    %43 = vector.broadcast %42 : vector<8x1xf32> to vector<8x8xf32>
    %44 = arith.subf %40, %43 : vector<8x8xf32>
    %45 = math.exp %44 : vector<8x8xf32>
    %cst_18 = arith.constant dense<0.000000e+00> : vector<8xf32>
    %46 = vector.multi_reduction <add>, %45, %cst_18 [1] : vector<8x8xf32> to vector<8xf32>
    %47 = vector.shape_cast %46 : vector<8xf32> to vector<8x1xf32>
    %48 = tpu.reciprocal %47 {approx = true} : vector<8x1xf32> -> vector<8x1xf32>
    %49 = vector.broadcast %48 : vector<8x1xf32> to vector<8x8xf32>
    %50 = arith.mulf %45, %49 : vector<8x8xf32>
    %cst_19 = arith.constant dense<0.000000e+00> : vector<8x8xf32>
    %51 = tpu.matmul %50, %37, %cst_19 {dimension_numbers = #tpu.dot_dimension_numbers<[1], [0], [0], [1], [0, 0, 1, 1], [], []>} : vector<8x8xf32>, vector<8x8xf32>, vector<8x8xf32> -> vector<8x8xf32>
    %52 = vector.extract_strided_slice %13 {offsets = [0, 16], sizes = [8, 8], strides = [1, 1]} : vector<8x32xf32> to vector<8x8xf32>
    %53 = vector.extract_strided_slice %14 {offsets = [0, 16], sizes = [8, 8], strides = [1, 1]} : vector<8x32xf32> to vector<8x8xf32>
    %54 = vector.extract_strided_slice %15 {offsets = [0, 16], sizes = [8, 8], strides = [1, 1]} : vector<8x32xf32> to vector<8x8xf32>
    %cst_20 = arith.constant dense<0.000000e+00> : vector<8x8xf32>
    %55 = tpu.matmul %52, %53, %cst_20 {dimension_numbers = #tpu.dot_dimension_numbers<[1], [1], [0], [0], [0, 0, 1, 0], [], []>} : vector<8x8xf32>, vector<8x8xf32>, vector<8x8xf32> -> vector<8x8xf32>
    %56 = vector.broadcast %17 : vector<1x8xf32> to vector<8x8xf32>
    %57 = arith.addf %55, %56 : vector<8x8xf32>
    %cst_21 = arith.constant dense<0xFF800000> : vector<8xf32>
    %58 = vector.multi_reduction <maximumf>, %57, %cst_21 [1] : vector<8x8xf32> to vector<8xf32>
    %59 = vector.shape_cast %58 : vector<8xf32> to vector<8x1xf32>
    %60 = vector.broadcast %59 : vector<8x1xf32> to vector<8x8xf32>
    %61 = arith.subf %57, %60 : vector<8x8xf32>
    %62 = math.exp %61 : vector<8x8xf32>
    %cst_22 = arith.constant dense<0.000000e+00> : vector<8xf32>
    %63 = vector.multi_reduction <add>, %62, %cst_22 [1] : vector<8x8xf32> to vector<8xf32>
    %64 = vector.shape_cast %63 : vector<8xf32> to vector<8x1xf32>
    %65 = tpu.reciprocal %64 {approx = true} : vector<8x1xf32> -> vector<8x1xf32>
    %66 = vector.broadcast %65 : vector<8x1xf32> to vector<8x8xf32>
    %67 = arith.mulf %62, %66 : vector<8x8xf32>
    %cst_23 = arith.constant dense<0.000000e+00> : vector<8x8xf32>
    %68 = tpu.matmul %67, %54, %cst_23 {dimension_numbers = #tpu.dot_dimension_numbers<[1], [0], [0], [1], [0, 0, 1, 1], [], []>} : vector<8x8xf32>, vector<8x8xf32>, vector<8x8xf32> -> vector<8x8xf32>
    %69 = vector.extract_strided_slice %13 {offsets = [0, 24], sizes = [8, 8], strides = [1, 1]} : vector<8x32xf32> to vector<8x8xf32>
    %70 = vector.extract_strided_slice %14 {offsets = [0, 24], sizes = [8, 8], strides = [1, 1]} : vector<8x32xf32> to vector<8x8xf32>
    %71 = vector.extract_strided_slice %15 {offsets = [0, 24], sizes = [8, 8], strides = [1, 1]} : vector<8x32xf32> to vector<8x8xf32>
    %cst_24 = arith.constant dense<0.000000e+00> : vector<8x8xf32>
    %72 = tpu.matmul %69, %70, %cst_24 {dimension_numbers = #tpu.dot_dimension_numbers<[1], [1], [0], [0], [0, 0, 1, 0], [], []>} : vector<8x8xf32>, vector<8x8xf32>, vector<8x8xf32> -> vector<8x8xf32>
    %73 = vector.broadcast %17 : vector<1x8xf32> to vector<8x8xf32>
    %74 = arith.addf %72, %73 : vector<8x8xf32>
    %cst_25 = arith.constant dense<0xFF800000> : vector<8xf32>
    %75 = vector.multi_reduction <maximumf>, %74, %cst_25 [1] : vector<8x8xf32> to vector<8xf32>
    %76 = vector.shape_cast %75 : vector<8xf32> to vector<8x1xf32>
    %77 = vector.broadcast %76 : vector<8x1xf32> to vector<8x8xf32>
    %78 = arith.subf %74, %77 : vector<8x8xf32>
    %79 = math.exp %78 : vector<8x8xf32>
    %cst_26 = arith.constant dense<0.000000e+00> : vector<8xf32>
    %80 = vector.multi_reduction <add>, %79, %cst_26 [1] : vector<8x8xf32> to vector<8xf32>
    %81 = vector.shape_cast %80 : vector<8xf32> to vector<8x1xf32>
    %82 = tpu.reciprocal %81 {approx = true} : vector<8x1xf32> -> vector<8x1xf32>
    %83 = vector.broadcast %82 : vector<8x1xf32> to vector<8x8xf32>
    %84 = arith.mulf %79, %83 : vector<8x8xf32>
    %cst_27 = arith.constant dense<0.000000e+00> : vector<8x8xf32>
    %85 = tpu.matmul %84, %71, %cst_27 {dimension_numbers = #tpu.dot_dimension_numbers<[1], [0], [0], [1], [0, 0, 1, 1], [], []>} : vector<8x8xf32>, vector<8x8xf32>, vector<8x8xf32> -> vector<8x8xf32>
    %86 = tpu.concatenate %34, %51, %68, %85 in 1 : vector<8x8xf32>, vector<8x8xf32>, vector<8x8xf32>, vector<8x8xf32> -> vector<8x32xf32>
    %c0_28 = arith.constant 0 : index
    %c0_29 = arith.constant 0 : index
    %c0_30 = arith.constant 0 : index
    %87 = vector.load %arg8[%c0_28, %c0_29, %c0_30] : memref<1x32x32xf32, #tpu.memory_space<vmem>>, vector<1x32x32xf32>
    %88 = vector.shape_cast %87 : vector<1x32x32xf32> to vector<32x32xf32>
    %cst_31 = arith.constant dense<0.000000e+00> : vector<8x32xf32>
    %89 = tpu.matmul %86, %88, %cst_31 {dimension_numbers = #tpu.dot_dimension_numbers<[1], [0], [0], [1], [0, 0, 1, 1], [], []>} : vector<8x32xf32>, vector<32x32xf32>, vector<8x32xf32> -> vector<8x32xf32>
    %c0_32 = arith.constant 0 : index
    %c0_33 = arith.constant 0 : index
    %c0_34 = arith.constant 0 : index
    %90 = vector.load %arg9[%c0_32, %c0_33, %c0_34] : memref<1x1x32xf32, #tpu.memory_space<vmem>>, vector<1x1x32xf32>
    %91 = vector.shape_cast %90 : vector<1x1x32xf32> to vector<1x32xf32>
    %92 = vector.broadcast %91 : vector<1x32xf32> to vector<8x32xf32>
    %93 = arith.addf %89, %92 : vector<8x32xf32>
    %94 = arith.addf %93, %3 : vector<8x32xf32>
    %c0_35 = arith.constant 0 : index
    %c0_36 = arith.constant 0 : index
    %c0_37 = arith.constant 0 : index
    %95 = vector.load %arg10[%c0_35, %c0_36, %c0_37] : memref<1x1x32xf32, #tpu.memory_space<vmem>>, vector<1x1x32xf32>
    %96 = vector.shape_cast %95 : vector<1x1x32xf32> to vector<1x32xf32>
    %c0_38 = arith.constant 0 : index
    %c0_39 = arith.constant 0 : index
    %c0_40 = arith.constant 0 : index
    %97 = vector.load %arg11[%c0_38, %c0_39, %c0_40] : memref<1x1x32xf32, #tpu.memory_space<vmem>>, vector<1x1x32xf32>
    %98 = vector.shape_cast %97 : vector<1x1x32xf32> to vector<1x32xf32>
    %cst_41 = arith.constant dense<0.000000e+00> : vector<8xf32>
    %99 = vector.multi_reduction <add>, %94, %cst_41 [1] : vector<8x32xf32> to vector<8xf32>
    %100 = vector.shape_cast %99 : vector<8xf32> to vector<8x1xf32>
    %cst_42 = arith.constant 3.200000e+01 : f32
    %101 = vector.broadcast %cst_42 : f32 to vector<8x1xf32>
    %102 = arith.divf %100, %101 : vector<8x1xf32>
    %103 = vector.broadcast %102 : vector<8x1xf32> to vector<8x32xf32>
    %104 = arith.subf %94, %103 : vector<8x32xf32>
    %105 = arith.mulf %104, %104 : vector<8x32xf32>
    %cst_43 = arith.constant dense<0.000000e+00> : vector<8xf32>
    %106 = vector.multi_reduction <add>, %105, %cst_43 [1] : vector<8x32xf32> to vector<8xf32>
    %107 = vector.shape_cast %106 : vector<8xf32> to vector<8x1xf32>
    %cst_44 = arith.constant 3.200000e+01 : f32
    %108 = vector.broadcast %cst_44 : f32 to vector<8x1xf32>
    %109 = arith.divf %107, %108 : vector<8x1xf32>
    %cst_45 = arith.constant 9.99999996E-13 : f32
    %110 = vector.broadcast %cst_45 : f32 to vector<8x1xf32>
    %111 = arith.addf %109, %110 : vector<8x1xf32>
    %112 = math.rsqrt %111 : vector<8x1xf32>
    %113 = vector.broadcast %112 : vector<8x1xf32> to vector<8x32xf32>
    %114 = arith.mulf %104, %113 : vector<8x32xf32>
    %115 = vector.broadcast %96 : vector<1x32xf32> to vector<8x32xf32>
    %116 = arith.mulf %114, %115 : vector<8x32xf32>
    %117 = vector.broadcast %98 : vector<1x32xf32> to vector<8x32xf32>
    %118 = arith.addf %116, %117 : vector<8x32xf32>
    %c0_46 = arith.constant 0 : index
    %c0_47 = arith.constant 0 : index
    %c0_48 = arith.constant 0 : index
    %119 = vector.load %arg12[%c0_46, %c0_47, %c0_48] : memref<1x32x64xf32, #tpu.memory_space<vmem>>, vector<1x32x64xf32>
    %120 = vector.shape_cast %119 : vector<1x32x64xf32> to vector<32x64xf32>
    %cst_49 = arith.constant dense<0.000000e+00> : vector<8x64xf32>
    %121 = tpu.matmul %118, %120, %cst_49 {dimension_numbers = #tpu.dot_dimension_numbers<[1], [0], [0], [1], [0, 0, 1, 1], [], []>} : vector<8x32xf32>, vector<32x64xf32>, vector<8x64xf32> -> vector<8x64xf32>
    %c0_50 = arith.constant 0 : index
    %c0_51 = arith.constant 0 : index
    %c0_52 = arith.constant 0 : index
    %122 = vector.load %arg13[%c0_50, %c0_51, %c0_52] : memref<1x1x64xf32, #tpu.memory_space<vmem>>, vector<1x1x64xf32>
    %123 = vector.shape_cast %122 : vector<1x1x64xf32> to vector<1x64xf32>
    %124 = vector.broadcast %123 : vector<1x64xf32> to vector<8x64xf32>
    %125 = arith.addf %121, %124 : vector<8x64xf32>
    %cst_53 = arith.constant 5.000000e-01 : f32
    %126 = vector.broadcast %cst_53 : f32 to vector<8x64xf32>
    %127 = arith.mulf %126, %125 : vector<8x64xf32>
    %cst_54 = arith.constant 4.471500e-02 : f32
    %128 = vector.broadcast %cst_54 : f32 to vector<8x64xf32>
    %129 = arith.mulf %128, %125 : vector<8x64xf32>
    %130 = arith.mulf %129, %125 : vector<8x64xf32>
    %131 = arith.mulf %130, %125 : vector<8x64xf32>
    %132 = arith.addf %125, %131 : vector<8x64xf32>
    %cst_55 = arith.constant 0.797884583 : f32
    %133 = vector.broadcast %cst_55 : f32 to vector<8x64xf32>
    %134 = arith.mulf %133, %132 : vector<8x64xf32>
    %135 = math.tanh %134 : vector<8x64xf32>
    %cst_56 = arith.constant 1.000000e+00 : f32
    %136 = vector.broadcast %cst_56 : f32 to vector<8x64xf32>
    %137 = arith.addf %136, %135 : vector<8x64xf32>
    %138 = arith.mulf %127, %137 : vector<8x64xf32>
    %c0_57 = arith.constant 0 : index
    %c0_58 = arith.constant 0 : index
    %c0_59 = arith.constant 0 : index
    %139 = vector.load %arg14[%c0_57, %c0_58, %c0_59] : memref<1x64x32xf32, #tpu.memory_space<vmem>>, vector<1x64x32xf32>
    %140 = vector.shape_cast %139 : vector<1x64x32xf32> to vector<64x32xf32>
    %cst_60 = arith.constant dense<0.000000e+00> : vector<8x32xf32>
    %141 = tpu.matmul %138, %140, %cst_60 {dimension_numbers = #tpu.dot_dimension_numbers<[1], [0], [0], [1], [0, 0, 1, 1], [], []>} : vector<8x64xf32>, vector<64x32xf32>, vector<8x32xf32> -> vector<8x32xf32>
    %c0_61 = arith.constant 0 : index
    %c0_62 = arith.constant 0 : index
    %c0_63 = arith.constant 0 : index
    %142 = vector.load %arg15[%c0_61, %c0_62, %c0_63] : memref<1x1x32xf32, #tpu.memory_space<vmem>>, vector<1x1x32xf32>
    %143 = vector.shape_cast %142 : vector<1x1x32xf32> to vector<1x32xf32>
    %144 = vector.broadcast %143 : vector<1x32xf32> to vector<8x32xf32>
    %145 = arith.addf %141, %144 : vector<8x32xf32>
    %146 = arith.addf %145, %118 : vector<8x32xf32>
    %c0_64 = arith.constant 0 : index
    %c0_65 = arith.constant 0 : index
    %c0_66 = arith.constant 0 : index
    %147 = vector.load %arg16[%c0_64, %c0_65, %c0_66] : memref<1x1x32xf32, #tpu.memory_space<vmem>>, vector<1x1x32xf32>
    %148 = vector.shape_cast %147 : vector<1x1x32xf32> to vector<1x32xf32>
    %c0_67 = arith.constant 0 : index
    %c0_68 = arith.constant 0 : index
    %c0_69 = arith.constant 0 : index
    %149 = vector.load %arg17[%c0_67, %c0_68, %c0_69] : memref<1x1x32xf32, #tpu.memory_space<vmem>>, vector<1x1x32xf32>
    %150 = vector.shape_cast %149 : vector<1x1x32xf32> to vector<1x32xf32>
    %cst_70 = arith.constant dense<0.000000e+00> : vector<8xf32>
    %151 = vector.multi_reduction <add>, %146, %cst_70 [1] : vector<8x32xf32> to vector<8xf32>
    %152 = vector.shape_cast %151 : vector<8xf32> to vector<8x1xf32>
    %cst_71 = arith.constant 3.200000e+01 : f32
    %153 = vector.broadcast %cst_71 : f32 to vector<8x1xf32>
    %154 = arith.divf %152, %153 : vector<8x1xf32>
    %155 = vector.broadcast %154 : vector<8x1xf32> to vector<8x32xf32>
    %156 = arith.subf %146, %155 : vector<8x32xf32>
    %157 = arith.mulf %156, %156 : vector<8x32xf32>
    %cst_72 = arith.constant dense<0.000000e+00> : vector<8xf32>
    %158 = vector.multi_reduction <add>, %157, %cst_72 [1] : vector<8x32xf32> to vector<8xf32>
    %159 = vector.shape_cast %158 : vector<8xf32> to vector<8x1xf32>
    %cst_73 = arith.constant 3.200000e+01 : f32
    %160 = vector.broadcast %cst_73 : f32 to vector<8x1xf32>
    %161 = arith.divf %159, %160 : vector<8x1xf32>
    %cst_74 = arith.constant 9.99999996E-13 : f32
    %162 = vector.broadcast %cst_74 : f32 to vector<8x1xf32>
    %163 = arith.addf %161, %162 : vector<8x1xf32>
    %164 = math.rsqrt %163 : vector<8x1xf32>
    %165 = vector.broadcast %164 : vector<8x1xf32> to vector<8x32xf32>
    %166 = arith.mulf %156, %165 : vector<8x32xf32>
    %167 = vector.broadcast %148 : vector<1x32xf32> to vector<8x32xf32>
    %168 = arith.mulf %166, %167 : vector<8x32xf32>
    %169 = vector.broadcast %150 : vector<1x32xf32> to vector<8x32xf32>
    %170 = arith.addf %168, %169 : vector<8x32xf32>
    %c0_75 = arith.constant 0 : index
    %c0_76 = arith.constant 0 : index
    %171 = vector.load %arg18[%c0_75, %c0_76] : memref<8x32xf32, #tpu.memory_space<vmem>>, vector<8x32xf32>
    tpu.vector_store %arg18[%c0_75, %c0_76], %170 {strides = array<i32>} : memref<8x32xf32, #tpu.memory_space<vmem>>, vector<8x32xf32>,
    return
  }
  func.func @transform_0(%arg0: i32, %arg1: i32) -> (i32, i32) {
    %c0_i32 = arith.constant 0 : i32
    %c0_i32_0 = arith.constant 0 : i32
    return %arg0, %c0_i32 : i32, i32
  }
  func.func @transform_1(%arg0: i32, %arg1: i32) -> (i32, i32, i32) {
    %c0_i32 = arith.constant 0 : i32
    %c0_i32_0 = arith.constant 0 : i32
    %c0_i32_1 = arith.constant 0 : i32
    return %arg0, %c0_i32, %c0_i32_0 : i32, i32, i32
  }
  func.func @transform_2(%arg0: i32, %arg1: i32) -> (i32, i32) {
    %c0_i32 = arith.constant 0 : i32
    %c0_i32_0 = arith.constant 0 : i32
    %c0_i32_1 = arith.constant 0 : i32
    return %c0_i32, %c0_i32_0 : i32, i32
  }
  func.func @transform_3(%arg0: i32, %arg1: i32) -> (i32, i32) {
    %c0_i32 = arith.constant 0 : i32
    %c0_i32_0 = arith.constant 0 : i32
    %c0_i32_1 = arith.constant 0 : i32
    return %c0_i32, %c0_i32_0 : i32, i32
  }
  func.func @transform_4(%arg0: i32, %arg1: i32) -> (i32, i32, i32) {
    %c0_i32 = arith.constant 0 : i32
    %c0_i32_0 = arith.constant 0 : i32
    %c0_i32_1 = arith.constant 0 : i32
    return %arg1, %c0_i32, %c0_i32_0 : i32, i32, i32
  }
  func.func @transform_5(%arg0: i32, %arg1: i32) -> (i32, i32, i32) {
    %c0_i32 = arith.constant 0 : i32
    %c0_i32_0 = arith.constant 0 : i32
    %c0_i32_1 = arith.constant 0 : i32
    return %arg1, %c0_i32, %c0_i32_0 : i32, i32, i32
  }
  func.func @transform_6(%arg0: i32, %arg1: i32) -> (i32, i32, i32) {
    %c0_i32 = arith.constant 0 : i32
    %c0_i32_0 = arith.constant 0 : i32
    %c0_i32_1 = arith.constant 0 : i32
    return %arg1, %c0_i32, %c0_i32_0 : i32, i32, i32
  }
  func.func @transform_7(%arg0: i32, %arg1: i32) -> (i32, i32, i32) {
    %c0_i32 = arith.constant 0 : i32
    %c0_i32_0 = arith.constant 0 : i32
    %c0_i32_1 = arith.constant 0 : i32
    return %arg1, %c0_i32, %c0_i32_0 : i32, i32, i32
  }
  func.func @transform_8(%arg0: i32, %arg1: i32) -> (i32, i32, i32) {
    %c0_i32 = arith.constant 0 : i32
    %c0_i32_0 = arith.constant 0 : i32
    %c0_i32_1 = arith.constant 0 : i32
    return %arg1, %c0_i32, %c0_i32_0 : i32, i32, i32
  }
  func.func @transform_9(%arg0: i32, %arg1: i32) -> (i32, i32, i32) {
    %c0_i32 = arith.constant 0 : i32
    %c0_i32_0 = arith.constant 0 : i32
    %c0_i32_1 = arith.constant 0 : i32
    return %arg1, %c0_i32, %c0_i32_0 : i32, i32, i32
  }
  func.func @transform_10(%arg0: i32, %arg1: i32) -> (i32, i32, i32) {
    %c0_i32 = arith.constant 0 : i32
    %c0_i32_0 = arith.constant 0 : i32
    %c0_i32_1 = arith.constant 0 : i32
    return %arg1, %c0_i32, %c0_i32_0 : i32, i32, i32
  }
  func.func @transform_11(%arg0: i32, %arg1: i32) -> (i32, i32, i32) {
    %c0_i32 = arith.constant 0 : i32
    %c0_i32_0 = arith.constant 0 : i32
    %c0_i32_1 = arith.constant 0 : i32
    return %arg1, %c0_i32, %c0_i32_0 : i32, i32, i32
  }
  func.func @transform_12(%arg0: i32, %arg1: i32) -> (i32, i32, i32) {
    %c0_i32 = arith.constant 0 : i32
    %c0_i32_0 = arith.constant 0 : i32
    %c0_i32_1 = arith.constant 0 : i32
    return %arg1, %c0_i32, %c0_i32_0 : i32, i32, i32
  }
  func.func @transform_13(%arg0: i32, %arg1: i32) -> (i32, i32, i32) {
    %c0_i32 = arith.constant 0 : i32
    %c0_i32_0 = arith.constant 0 : i32
    %c0_i32_1 = arith.constant 0 : i32
    return %arg1, %c0_i32, %c0_i32_0 : i32, i32, i32
  }
  func.func @transform_14(%arg0: i32, %arg1: i32) -> (i32, i32, i32) {
    %c0_i32 = arith.constant 0 : i32
    %c0_i32_0 = arith.constant 0 : i32
    %c0_i32_1 = arith.constant 0 : i32
    return %arg1, %c0_i32, %c0_i32_0 : i32, i32, i32
  }
  func.func @transform_15(%arg0: i32, %arg1: i32) -> (i32, i32, i32) {
    %c0_i32 = arith.constant 0 : i32
    %c0_i32_0 = arith.constant 0 : i32
    %c0_i32_1 = arith.constant 0 : i32
    return %arg1, %c0_i32, %c0_i32_0 : i32, i32, i32
  }
  func.func @transform_16(%arg0: i32, %arg1: i32) -> (i32, i32) {
    %c0_i32 = arith.constant 0 : i32
    %c0_i32_0 = arith.constant 0 : i32
    return %arg0, %c0_i32 : i32, i32
  }
}

</mosaic_0001>

<llo_original>
// kernel: tpu_custom_call.1
$region0: #{tpu_custom_call.1}
  #allocation0 [shape = 'u32[]', space=smem, size = 0x4, offset = 0x4, fixed_abs, tag = 'smem constant byte address 0x4 - core index']
  #allocation1 [shape = 'u32[72,128]{1,0:T(1,128)}', space=vmem, size = 0x9000, scoped, tag = 'internal scratch']
  %s0 = inlined_call_operand.hbm [shape: f32[16,32], index: 0, kind: input, shape index: {}]
  %s1 = inlined_call_operand.hbm [shape: f32[2,1,8], index: 1, kind: input, shape index: {}]
  %s2 = inlined_call_operand.hbm [shape: f32[1,32], index: 2, kind: input, shape index: {}]
  %s3 = inlined_call_operand.hbm [shape: f32[1,32], index: 3, kind: input, shape index: {}]
  %s4 = inlined_call_operand.vmem [shape: f32[2,32,96], index: 4, kind: input, shape index: {}]
  %s5 = inlined_call_operand.vmem [shape: f32[2,1,96], index: 5, kind: input, shape index: {}]
  %s6 = inlined_call_operand.vmem [shape: f32[2,32,32], index: 6, kind: input, shape index: {}]
  %s7 = inlined_call_operand.vmem [shape: f32[2,1,32], index: 7, kind: input, shape index: {}]
  %s8 = inlined_call_operand.hbm [shape: f32[2,1,32], index: 8, kind: input, shape index: {}]
  %s9 = inlined_call_operand.vmem [shape: f32[2,1,32], index: 9, kind: input, shape index: {}]
  %s10 = inlined_call_operand.vmem [shape: f32[2,32,64], index: 10, kind: input, shape index: {}]
  %s11 = inlined_call_operand.vmem [shape: f32[2,1,64], index: 11, kind: input, shape index: {}]
  %s12 = inlined_call_operand.vmem [shape: f32[2,64,32], index: 12, kind: input, shape index: {}]
  %s13 = inlined_call_operand.vmem [shape: f32[2,1,32], index: 13, kind: input, shape index: {}]
  %s14 = inlined_call_operand.hbm [shape: f32[2,1,32], index: 14, kind: input, shape index: {}]
  %s15 = inlined_call_operand.vmem [shape: f32[2,1,32], index: 15, kind: input, shape index: {}]
  %s16 = inlined_call_operand.hbm [shape: f32[16,32], index: 16, kind: output, shape index: {}]
  %s17 = sld [smem:[#allocation0]]
  $region125: #{tpu_custom_call.1} parent=0
    _
  %s19 = ssub.s32 1, %s17
  %s20 = scalar_select 0, %s19, %s17
  $region1: #{tpu_custom_call.1} parent=0
    #allocation2 [shape = 'u8[8192]{0}', space=vmem, size = 0x2000, scoped, tag = 'input window, operand 0']
    #allocation3 [shape = 's32[2]{0}', space=sflag, size = 0x8, scoped, tag = 'scoped memory for tpu_custom_call.1']
    #allocation4 [shape = 's32[2]{0}', space=sflag, size = 0x8, scoped, tag = 'scoped memory for tpu_custom_call.1']
    #allocation5 [shape = 'u8[1024]{0}', space=vmem, size = 0x400, scoped, tag = 'input window, operand 1']
    #allocation6 [shape = 's32[2]{0}', space=sflag, size = 0x8, scoped, tag = 'scoped memory for tpu_custom_call.1']
    #allocation7 [shape = 'u8[512]{0}', space=vmem, size = 0x400, scoped, tag = 'input window, operand 2, single buffered']
    #allocation8 [shape = 'u8[512]{0}', space=vmem, size = 0x400, scoped, tag = 'input window, operand 3, single buffered']
    #allocation9 [shape = 's32[1]{0}', space=sflag, size = 0x4, scoped, tag = 'scoped memory for tpu_custom_call.1']
    #allocation10 [shape = 'u8[1024]{0}', space=vmem, size = 0x400, scoped, tag = 'input window, operand 8']
    #allocation11 [shape = 'u8[1024]{0}', space=vmem, size = 0x400, scoped, tag = 'input window, operand 14']
    #allocation12 [shape = 'u8[8192]{0}', space=vmem, size = 0x2000, scoped, tag = 'output window, operand 0']
    %21 = vsyncpa [#allocation3], 0
    %s22 = scalar_lea.sflag [#allocation3], 1
    %23 = vsyncpa %s22, 0
    %24 = vsyncpa [#allocation6], 0
    %s25 = scalar_lea.sflag [#allocation6], 1
    %26 = vsyncpa %s25, 0
    %27 = vsyncpa [#allocation9], 0
    %28 = vsyncpa [#allocation4], 0
    %s29 = scalar_lea.sflag [#allocation4], 1
    %30 = vsyncpa %s29, 0
    loop: start=0, step=1, limit=6
    $region2: #{tpu_custom_call.1} parent=1 // loop_pre_header
      _
    $region3: #{tpu_custom_call.1} parent=1 // loop_header
      %s32 = sphi 0, %s36
      %p33 = scmp.ge.s32.totalorder %s32, 6
      %s39 = sphi 0, %s51
      %s40 = sphi 0, %s47
      %s41 = sphi 0, %s39
      %s42 = sphi 0, %s40
      %s43 = sphi 0, %s41
      %s44 = sphi 0, %s42
      %s54 = sphi 0, %s56
      %s57 = sphi 0, %s54
      %s58 = sphi 0, %s57
      %s74 = sphi 0, %s58
      %s80 = sphi 0, %s82
      %s83 = sphi 0, %s80
      %s84 = sphi 0, %s83
      %s100 = sphi 0, %s84
      %s104 = sphi 0, %s104
      %s106 = sphi 0, %s104
      %s107 = sphi 0, %s106
      %s121 = sphi 0, %s107
      %s125 = sphi 0, %s125
      %s127 = sphi 0, %s125
      %s128 = sphi 0, %s127
      %s142 = sphi 0, %s128
      %s148 = sphi 0, %s150
      %s151 = sphi 0, %s148
      %s152 = sphi 0, %s151
      %s168 = sphi 0, %s152
      %s174 = sphi 0, %s176
      %s177 = sphi 0, %s174
      %s178 = sphi 0, %s177
      %s194 = sphi 0, %s178
      %s200 = sphi 0, %s202
      %s203 = sphi 0, %s200
      %s204 = sphi 0, %s203
      %s220 = sphi 0, %s204
      %s226 = sphi 0, %s228
      %s229 = sphi 0, %s226
      %s230 = sphi 0, %s229
      %s246 = sphi 0, %s230
      %s252 = sphi 0, %s254
      %s255 = sphi 0, %s252
      %s256 = sphi 0, %s255
      %s272 = sphi 0, %s256
      %s278 = sphi 0, %s280
      %s281 = sphi 0, %s278
      %s282 = sphi 0, %s281
      %s298 = sphi 0, %s282
      %s304 = sphi 0, %s306
      %s307 = sphi 0, %s304
      %s308 = sphi 0, %s307
      %s324 = sphi 0, %s308
      %s330 = sphi 0, %s332
      %s333 = sphi 0, %s330
      %s334 = sphi 0, %s333
      %s350 = sphi 0, %s334
      %s356 = sphi 0, %s358
      %s359 = sphi 0, %s356
      %s360 = sphi 0, %s359
      %s376 = sphi 0, %s360
      %s382 = sphi 0, %s384
      %s385 = sphi 0, %s382
      %s386 = sphi 0, %s385
      %s402 = sphi 0, %s386
      %s408 = sphi 0, %s410
      %s411 = sphi 0, %s408
      %s412 = sphi 0, %s411
      %s428 = sphi 0, %s412
      %s434 = sphi 0, %s436
      %s437 = sphi 0, %s434
      %s438 = sphi 0, %s437
      %s454 = sphi 0, %s438
      %s460 = sphi 0, %s462
      %s463 = sphi 0, %s460
      %s464 = sphi 0, %s463
      %s480 = sphi 0, %s464
    $region4: #{tpu_custom_call.1} parent=1 // loop_header_branch
      %35 = sbr.rel (%p33) target = $region8
    $region5: #{tpu_custom_call.1} parent=1 // loop_body
      %s37 = ssub.s32 %s32, 1
      %s38 = ssub.s32 %s32, 2
      %s45 = sadd.s32 1, %s40
      %p46 = scmp.ge.s32.totalorder %s45, 2
      %s47 = scalar_select %p46, 0, %s45
      %s48 = sadd.s32 1, %s39
      %s49 = scalar_select %p46, %s48, %s39
      %p50 = scmp.ge.s32.totalorder %s49, 2
      %s51 = scalar_select %p50, 0, %s49
      %s52 = ssub.s32 %s39, %s51
      %p53 = scmp.eq.s32.totalorder %s52, 0
      %s55 = sadd.s32 %s54, 1
      %s56 = scalar_select %p53, %s54, %s55
      %p59 = pneg %p53
      %p60 = scmp.eq.s32.totalorder %s32, 3
      %p61 = por %p59, %p60
      %p62 = scmp.ne.s32.totalorder %s54, %s57
      %p63 = scmp.eq.s32.totalorder %s32, 0
      %p64 = por %p62, %p63
      %p65 = scmp.ne.s32.totalorder %s54, %s57
      %p66 = scmp.eq.s32.totalorder %s37, 3
      %p67 = por %p65, %p66
      %p68 = scmp.ne.s32.totalorder %s57, %s58
      %p69 = scmp.eq.s32.totalorder %s37, 0
      %p70 = por %p68, %p69
      %p71 = scmp.ne.s32.totalorder %s57, %s58
      %p72 = scmp.eq.s32.totalorder %s38, 3
      %p73 = por %p71, %p72
      %p75 = scmp.ne.s32.totalorder %s58, %s74
      %p76 = scmp.eq.s32.totalorder %s38, 0
      %p77 = por %p75, %p76
      %s78 = ssub.s32 %s39, %s51
      %p79 = scmp.eq.s32.totalorder %s78, 0
      %s81 = sadd.s32 %s80, 1
      %s82 = scalar_select %p79, %s80, %s81
      %p85 = pneg %p79
      %p86 = scmp.eq.s32.totalorder %s32, 3
      %p87 = por %p85, %p86
      %p88 = scmp.ne.s32.totalorder %s80, %s83
      %p89 = scmp.eq.s32.totalorder %s32, 0
      %p90 = por %p88, %p89
      %p91 = scmp.ne.s32.totalorder %s80, %s83
      %p92 = scmp.eq.s32.totalorder %s37, 3
      %p93 = por %p91, %p92
      %p94 = scmp.ne.s32.totalorder %s83, %s84
      %p95 = scmp.eq.s32.totalorder %s37, 0
      %p96 = por %p94, %p95
      %p97 = scmp.ne.s32.totalorder %s83, %s84
      %p98 = scmp.eq.s32.totalorder %s38, 3
      %p99 = por %p97, %p98
      %p101 = scmp.ne.s32.totalorder %s84, %s100
      %p102 = scmp.eq.s32.totalorder %s38, 0
      %p103 = por %p101, %p102
      %s105 = sadd.s32 %s104, 1
      %p108 = scmp.eq.s32.totalorder %s32, 3
      %p109 = scmp.ne.s32.totalorder %s104, %s106
      %p110 = scmp.eq.s32.totalorder %s32, 0
      %p111 = por %p109, %p110
      %p112 = scmp.ne.s32.totalorder %s104, %s106
      %p113 = scmp.eq.s32.totalorder %s37, 3
      %p114 = por %p112, %p113
      %p115 = scmp.ne.s32.totalorder %s106, %s107
      %p116 = scmp.eq.s32.totalorder %s37, 0
      %p117 = por %p115, %p116
      %p118 = scmp.ne.s32.totalorder %s106, %s107
      %p119 = scmp.eq.s32.totalorder %s38, 3
      %p120 = por %p118, %p119
      %p122 = scmp.ne.s32.totalorder %s107, %s121
      %p123 = scmp.eq.s32.totalorder %s38, 0
      %p124 = por %p122, %p123
      %s126 = sadd.s32 %s125, 1
      %p129 = scmp.eq.s32.totalorder %s32, 3
      %p130 = scmp.ne.s32.totalorder %s125, %s127
      %p131 = scmp.eq.s32.totalorder %s32, 0
      %p132 = por %p130, %p131
      %p133 = scmp.ne.s32.totalorder %s125, %s127
      %p134 = scmp.eq.s32.totalorder %s37, 3
      %p135 = por %p133, %p134
      %p136 = scmp.ne.s32.totalorder %s127, %s128
      %p137 = scmp.eq.s32.totalorder %s37, 0
      %p138 = por %p136, %p137
      %p139 = scmp.ne.s32.totalorder %s127, %s128
      %p140 = scmp.eq.s32.totalorder %s38, 3
      %p141 = por %p139, %p140
      %p143 = scmp.ne.s32.totalorder %s128, %s142
      %p144 = scmp.eq.s32.totalorder %s38, 0
      %p145 = por %p143, %p144
      %s146 = ssub.s32 %s40, %s47
      %p147 = scmp.eq.s32.totalorder %s146, 0
      %s149 = sadd.s32 %s148, 1
      %s150 = scalar_select %p147, %s148, %s149
      %p153 = pneg %p147
      %p154 = scmp.eq.s32.totalorder %s32, 3
      %p155 = por %p153, %p154
      %p156 = scmp.ne.s32.totalorder %s148, %s151
      %p157 = scmp.eq.s32.totalorder %s32, 0
      %p158 = por %p156, %p157
      %p159 = scmp.ne.s32.totalorder %s148, %s151
      %p160 = scmp.eq.s32.totalorder %s37, 3
      %p161 = por %p159, %p160
      %p162 = scmp.ne.s32.totalorder %s151, %s152
      %p163 = scmp.eq.s32.totalorder %s37, 0
      %p164 = por %p162, %p163
      %p165 = scmp.ne.s32.totalorder %s151, %s152
      %p166 = scmp.eq.s32.totalorder %s38, 3
      %p167 = por %p165, %p166
      %p169 = scmp.ne.s32.totalorder %s152, %s168
      %p170 = scmp.eq.s32.totalorder %s38, 0
      %p171 = por %p169, %p170
      %s172 = ssub.s32 %s40, %s47
      %p173 = scmp.eq.s32.totalorder %s172, 0
      %s175 = sadd.s32 %s174, 1
      %s176 = scalar_select %p173, %s174, %s175
      %p179 = pneg %p173
      %p180 = scmp.eq.s32.totalorder %s32, 3
      %p181 = por %p179, %p180
      %p182 = scmp.ne.s32.totalorder %s174, %s177
      %p183 = scmp.eq.s32.totalorder %s32, 0
      %p184 = por %p182, %p183
      %p185 = scmp.ne.s32.totalorder %s174, %s177
      %p186 = scmp.eq.s32.totalorder %s37, 3
      %p187 = por %p185, %p186
      %p188 = scmp.ne.s32.totalorder %s177, %s178
      %p189 = scmp.eq.s32.totalorder %s37, 0
      %p190 = por %p188, %p189
      %p191 = scmp.ne.s32.totalorder %s177, %s178
      %p192 = scmp.eq.s32.totalorder %s38, 3
      %p193 = por %p191, %p192
      %p195 = scmp.ne.s32.totalorder %s178, %s194
      %p196 = scmp.eq.s32.totalorder %s38, 0
      %p197 = por %p195, %p196
      %s198 = ssub.s32 %s40, %s47
      %p199 = scmp.eq.s32.totalorder %s198, 0
      %s201 = sadd.s32 %s200, 1
      %s202 = scalar_select %p199, %s200, %s201
      %p205 = pneg %p199
      %p206 = scmp.eq.s32.totalorder %s32, 3
      %p207 = por %p205, %p206
      %p208 = scmp.ne.s32.totalorder %s200, %s203
      %p209 = scmp.eq.s32.totalorder %s32, 0
      %p210 = por %p208, %p209
      %p211 = scmp.ne.s32.totalorder %s200, %s203
      %p212 = scmp.eq.s32.totalorder %s37, 3
      %p213 = por %p211, %p212
      %p214 = scmp.ne.s32.totalorder %s203, %s204
      %p215 = scmp.eq.s32.totalorder %s37, 0
      %p216 = por %p214, %p215
      %p217 = scmp.ne.s32.totalorder %s203, %s204
      %p218 = scmp.eq.s32.totalorder %s38, 3
      %p219 = por %p217, %p218
      %p221 = scmp.ne.s32.totalorder %s204, %s220
      %p222 = scmp.eq.s32.totalorder %s38, 0
      %p223 = por %p221, %p222
      %s224 = ssub.s32 %s40, %s47
      %p225 = scmp.eq.s32.totalorder %s224, 0
      %s227 = sadd.s32 %s226, 1
      %s228 = scalar_select %p225, %s226, %s227
      %p231 = pneg %p225
      %p232 = scmp.eq.s32.totalorder %s32, 3
      %p233 = por %p231, %p232
      %p234 = scmp.ne.s32.totalorder %s226, %s229
      %p235 = scmp.eq.s32.totalorder %s32, 0
      %p236 = por %p234, %p235
      %p237 = scmp.ne.s32.totalorder %s226, %s229
      %p238 = scmp.eq.s32.totalorder %s37, 3
      %p239 = por %p237, %p238
      %p240 = scmp.ne.s32.totalorder %s229, %s230
      %p241 = scmp.eq.s32.totalorder %s37, 0
      %p242 = por %p240, %p241
      %p243 = scmp.ne.s32.totalorder %s229, %s230
      %p244 = scmp.eq.s32.totalorder %s38, 3
      %p245 = por %p243, %p244
      %p247 = scmp.ne.s32.totalorder %s230, %s246
      %p248 = scmp.eq.s32.totalorder %s38, 0
      %p249 = por %p247, %p248
      %s250 = ssub.s32 %s40, %s47
      %p251 = scmp.eq.s32.totalorder %s250, 0
      %s253 = sadd.s32 %s252, 1
      %s254 = scalar_select %p251, %s252, %s253
      %p257 = pneg %p251
      %p258 = scmp.eq.s32.totalorder %s32, 3
      %p259 = por %p257, %p258
      %p260 = scmp.ne.s32.totalorder %s252, %s255
      %p261 = scmp.eq.s32.totalorder %s32, 0
      %p262 = por %p260, %p261
      %p263 = scmp.ne.s32.totalorder %s252, %s255
      %p264 = scmp.eq.s32.totalorder %s37, 3
      %p265 = por %p263, %p264
      %p266 = scmp.ne.s32.totalorder %s255, %s256
      %p267 = scmp.eq.s32.totalorder %s37, 0
      %p268 = por %p266, %p267
      %p269 = scmp.ne.s32.totalorder %s255, %s256
      %p270 = scmp.eq.s32.totalorder %s38, 3
      %p271 = por %p269, %p270
      %p273 = scmp.ne.s32.totalorder %s256, %s272
      %p274 = scmp.eq.s32.totalorder %s38, 0
      %p275 = por %p273, %p274
      %s276 = ssub.s32 %s40, %s47
      %p277 = scmp.eq.s32.totalorder %s276, 0
      %s279 = sadd.s32 %s278, 1
      %s280 = scalar_select %p277, %s278, %s279
      %p283 = pneg %p277
      %p284 = scmp.eq.s32.totalorder %s32, 3
      %p285 = por %p283, %p284
      %p286 = scmp.ne.s32.totalorder %s278, %s281
      %p287 = scmp.eq.s32.totalorder %s32, 0
      %p288 = por %p286, %p287
      %p289 = scmp.ne.s32.totalorder %s278, %s281
      %p290 = scmp.eq.s32.totalorder %s37, 3
      %p291 = por %p289, %p290
      %p292 = scmp.ne.s32.totalorder %s281, %s282
      %p293 = scmp.eq.s32.totalorder %s37, 0
      %p294 = por %p292, %p293
      %p295 = scmp.ne.s32.totalorder %s281, %s282
      %p296 = scmp.eq.s32.totalorder %s38, 3
      %p297 = por %p295, %p296
      %p299 = scmp.ne.s32.totalorder %s282, %s298
      %p300 = scmp.eq.s32.totalorder %s38, 0
      %p301 = por %p299, %p300
      %s302 = ssub.s32 %s40, %s47
      %p303 = scmp.eq.s32.totalorder %s302, 0
      %s305 = sadd.s32 %s304, 1
      %s306 = scalar_select %p303, %s304, %s305
      %p309 = pneg %p303
      %p310 = scmp.eq.s32.totalorder %s32, 3
      %p311 = por %p309, %p310
      %p312 = scmp.ne.s32.totalorder %s304, %s307
      %p313 = scmp.eq.s32.totalorder %s32, 0
      %p314 = por %p312, %p313
      %p315 = scmp.ne.s32.totalorder %s304, %s307
      %p316 = scmp.eq.s32.totalorder %s37, 3
      %p317 = por %p315, %p316
      %p318 = scmp.ne.s32.totalorder %s307, %s308
      %p319 = scmp.eq.s32.totalorder %s37, 0
      %p320 = por %p318, %p319
      %p321 = scmp.ne.s32.totalorder %s307, %s308
      %p322 = scmp.eq.s32.totalorder %s38, 3
      %p323 = por %p321, %p322
      %p325 = scmp.ne.s32.totalorder %s308, %s324
      %p326 = scmp.eq.s32.totalorder %s38, 0
      %p327 = por %p325, %p326
      %s328 = ssub.s32 %s40, %s47
      %p329 = scmp.eq.s32.totalorder %s328, 0
      %s331 = sadd.s32 %s330, 1
      %s332 = scalar_select %p329, %s330, %s331
      %p335 = pneg %p329
      %p336 = scmp.eq.s32.totalorder %s32, 3
      %p337 = por %p335, %p336
      %p338 = scmp.ne.s32.totalorder %s330, %s333
      %p339 = scmp.eq.s32.totalorder %s32, 0
      %p340 = por %p338, %p339
      %p341 = scmp.ne.s32.totalorder %s330, %s333
      %p342 = scmp.eq.s32.totalorder %s37, 3
      %p343 = por %p341, %p342
      %p344 = scmp.ne.s32.totalorder %s333, %s334
      %p345 = scmp.eq.s32.totalorder %s37, 0
      %p346 = por %p344, %p345
      %p347 = scmp.ne.s32.totalorder %s333, %s334
      %p348 = scmp.eq.s32.totalorder %s38, 3
      %p349 = por %p347, %p348
      %p351 = scmp.ne.s32.totalorder %s334, %s350
      %p352 = scmp.eq.s32.totalorder %s38, 0
      %p353 = por %p351, %p352
      %s354 = ssub.s32 %s40, %s47
      %p355 = scmp.eq.s32.totalorder %s354, 0
      %s357 = sadd.s32 %s356, 1
      %s358 = scalar_select %p355, %s356, %s357
      %p361 = pneg %p355
      %p362 = scmp.eq.s32.totalorder %s32, 3
      %p363 = por %p361, %p362
      %p364 = scmp.ne.s32.totalorder %s356, %s359
      %p365 = scmp.eq.s32.totalorder %s32, 0
      %p366 = por %p364, %p365
      %p367 = scmp.ne.s32.totalorder %s356, %s359
      %p368 = scmp.eq.s32.totalorder %s37, 3
      %p369 = por %p367, %p368
      %p370 = scmp.ne.s32.totalorder %s359, %s360
      %p371 = scmp.eq.s32.totalorder %s37, 0
      %p372 = por %p370, %p371
      %p373 = scmp.ne.s32.totalorder %s359, %s360
      %p374 = scmp.eq.s32.totalorder %s38, 3
      %p375 = por %p373, %p374
      %p377 = scmp.ne.s32.totalorder %s360, %s376
      %p378 = scmp.eq.s32.totalorder %s38, 0
      %p379 = por %p377, %p378
      %s380 = ssub.s32 %s40, %s47
      %p381 = scmp.eq.s32.totalorder %s380, 0
      %s383 = sadd.s32 %s382, 1
      %s384 = scalar_select %p381, %s382, %s383
      %p387 = pneg %p381
      %p388 = scmp.eq.s32.totalorder %s32, 3
      %p389 = por %p387, %p388
      %p390 = scmp.ne.s32.totalorder %s382, %s385
      %p391 = scmp.eq.s32.totalorder %s32, 0
      %p392 = por %p390, %p391
      %p393 = scmp.ne.s32.totalorder %s382, %s385
      %p394 = scmp.eq.s32.totalorder %s37, 3
      %p395 = por %p393, %p394
      %p396 = scmp.ne.s32.totalorder %s385, %s386
      %p397 = scmp.eq.s32.totalorder %s37, 0
      %p398 = por %p396, %p397
      %p399 = scmp.ne.s32.totalorder %s385, %s386
      %p400 = scmp.eq.s32.totalorder %s38, 3
      %p401 = por %p399, %p400
      %p403 = scmp.ne.s32.totalorder %s386, %s402
      %p404 = scmp.eq.s32.totalorder %s38, 0
      %p405 = por %p403, %p404
      %s406 = ssub.s32 %s40, %s47
      %p407 = scmp.eq.s32.totalorder %s406, 0
      %s409 = sadd.s32 %s408, 1
      %s410 = scalar_select %p407, %s408, %s409
      %p413 = pneg %p407
      %p414 = scmp.eq.s32.totalorder %s32, 3
      %p415 = por %p413, %p414
      %p416 = scmp.ne.s32.totalorder %s408, %s411
      %p417 = scmp.eq.s32.totalorder %s32, 0
      %p418 = por %p416, %p417
      %p419 = scmp.ne.s32.totalorder %s408, %s411
      %p420 = scmp.eq.s32.totalorder %s37, 3
      %p421 = por %p419, %p420
      %p422 = scmp.ne.s32.totalorder %s411, %s412
      %p423 = scmp.eq.s32.totalorder %s37, 0
      %p424 = por %p422, %p423
      %p425 = scmp.ne.s32.totalorder %s411, %s412
      %p426 = scmp.eq.s32.totalorder %s38, 3
      %p427 = por %p425, %p426
      %p429 = scmp.ne.s32.totalorder %s412, %s428
      %p430 = scmp.eq.s32.totalorder %s38, 0
      %p431 = por %p429, %p430
      %s432 = ssub.s32 %s40, %s47
      %p433 = scmp.eq.s32.totalorder %s432, 0
      %s435 = sadd.s32 %s434, 1
      %s436 = scalar_select %p433, %s434, %s435
      %p439 = pneg %p433
      %p440 = scmp.eq.s32.totalorder %s32, 3
      %p441 = por %p439, %p440
      %p442 = scmp.ne.s32.totalorder %s434, %s437
      %p443 = scmp.eq.s32.totalorder %s32, 0
      %p444 = por %p442, %p443
      %p445 = scmp.ne.s32.totalorder %s434, %s437
      %p446 = scmp.eq.s32.totalorder %s37, 3
      %p447 = por %p445, %p446
      %p448 = scmp.ne.s32.totalorder %s437, %s438
      %p449 = scmp.eq.s32.totalorder %s37, 0
      %p450 = por %p448, %p449
      %p451 = scmp.ne.s32.totalorder %s437, %s438
      %p452 = scmp.eq.s32.totalorder %s38, 3
      %p453 = por %p451, %p452
      %p455 = scmp.ne.s32.totalorder %s438, %s454
      %p456 = scmp.eq.s32.totalorder %s38, 0
      %p457 = por %p455, %p456
      %s458 = ssub.s32 %s39, %s51
      %p459 = scmp.eq.s32.totalorder %s458, 0
      %s461 = sadd.s32 %s460, 1
      %s462 = scalar_select %p459, %s460, %s461
      %p465 = pneg %p459
      %p466 = scmp.eq.s32.totalorder %s32, 3
      %p467 = por %p465, %p466
      %p468 = scmp.ne.s32.totalorder %s460, %s463
      %p469 = scmp.eq.s32.totalorder %s32, 0
      %p470 = por %p468, %p469
      %p471 = scmp.ne.s32.totalorder %s460, %s463
      %p472 = scmp.eq.s32.totalorder %s37, 3
      %p473 = por %p471, %p472
      %p474 = scmp.ne.s32.totalorder %s463, %s464
      %p475 = scmp.eq.s32.totalorder %s37, 0
      %p476 = por %p474, %p475
      %p477 = scmp.ne.s32.totalorder %s463, %s464
      %p478 = scmp.eq.s32.totalorder %s38, 3
      %p479 = por %p477, %p478
      %p481 = scmp.ne.s32.totalorder %s464, %s480
      %p482 = scmp.eq.s32.totalorder %s38, 0
      %p483 = por %p481, %p482
      %p484 = scmp.le.s32.totalorder 1, %s32
      %p485 = scmp.lt.s32.totalorder %s32, 5
      %p486 = pnand %p484, %p485
      %p487 = pneg %p486
      // Predicated region
      $region9: #{tpu_custom_call.1} parent=5 // pred_check
        _
      $region10: #{tpu_custom_call.1} parent=5 // pred_check_branch
        %489 = sbr.rel (%p486) target = $region12
      $region11: #{tpu_custom_call.1} parent=5 // pred_region
        %s490 = ssub.s32 %s32, 1
        // Predicated region
        $region13: #{tpu_custom_call.1} parent=11 // pred_check
          %p491 = pneg %p117
        $region14: #{tpu_custom_call.1} parent=11 // pred_check_branch
          %493 = sbr.rel (%p491) target = $region16
        $region15: #{tpu_custom_call.1} parent=11 // pred_region
          %495 = vsyncadd [#allocation6], 0
          %s497 = sshll.u32 %s2, 4
          %s498 = int_to_ptr.hbm [resolvable:$true] %s497
          %s499 = sshll.u32 [#allocation7], 4
          %s500 = int_to_ptr.vmem [resolvable:$true] %s499
          %502 = dma.hbm_to_vmem [thread:$0]  %s498, 16, %s500, [#allocation6]
        $region16: #{tpu_custom_call.1} parent=11 // pred_fallthru
          _
        // Predicated region
        $region17: #{tpu_custom_call.1} parent=11 // pred_check
          %p503 = pneg %p138
        $region18: #{tpu_custom_call.1} parent=11 // pred_check_branch
          %505 = sbr.rel (%p503) target = $region20
        $region19: #{tpu_custom_call.1} parent=11 // pred_region
          %507 = vsyncadd [#allocation9], 0
          %s509 = sshll.u32 %s3, 4
          %s510 = int_to_ptr.hbm [resolvable:$true] %s509
          %s511 = sshll.u32 [#allocation8], 4
          %s512 = int_to_ptr.vmem [resolvable:$true] %s511
          %514 = dma.hbm_to_vmem [thread:$0]  %s510, 16, %s512, [#allocation9]
        $region20: #{tpu_custom_call.1} parent=11 // pred_fallthru
          _
      $region12: #{tpu_custom_call.1} parent=5 // pred_fallthru
        _
      %p515 = scmp.lt.s32.totalorder %s32, 4
      // Predicated region
      $region21: #{tpu_custom_call.1} parent=5 // pred_check
        %p516 = pneg %p515
      $region22: #{tpu_custom_call.1} parent=5 // pred_check_branch
        %518 = sbr.rel (%p516) target = $region24
      $region23: #{tpu_custom_call.1} parent=5 // pred_region
        // Predicated region
        $region25: #{tpu_custom_call.1} parent=23 // pred_check
          %p519 = pneg %p64
        $region26: #{tpu_custom_call.1} parent=23 // pred_check_branch
          %521 = sbr.rel (%p519) target = $region28
        $region27: #{tpu_custom_call.1} parent=23 // pred_region
          %s522 = sand.u32 %s32, 1
          %s523 = scalar_lea.sflag [#allocation3], %s522
          %s524 = sand.u32 %s54, 1
          %s525 = smul.addr %s524, 8
          %s526 = scalar_lea.vmem [#allocation2], %s525
          %528 = vsyncadd %s523, 0
          %s529 = smul.addr %s39, 8
          %s530 = scalar_lea.hbm %s0, %s529
          %s532 = sshll.u32 %s530, 4
          %s533 = int_to_ptr.hbm [resolvable:$true] %s532
          %s534 = sshll.u32 %s526, 4
          %s535 = int_to_ptr.vmem [resolvable:$true] %s534
          %537 = dma.hbm_to_vmem [thread:$0]  %s533, 128, %s535, %s523
        $region28: #{tpu_custom_call.1} parent=23 // pred_fallthru
          _
        // Predicated region
        $region29: #{tpu_custom_call.1} parent=23 // pred_check
          %p538 = pneg %p90
        $region30: #{tpu_custom_call.1} parent=23 // pred_check_branch
          %540 = sbr.rel (%p538) target = $region32
        $region31: #{tpu_custom_call.1} parent=23 // pred_region
          %s541 = sand.u32 %s32, 1
          %s542 = scalar_lea.sflag [#allocation6], %s541
          %s543 = sand.u32 %s80, 1
          %s544 = scalar_lea.vmem [#allocation5], %s543
          %546 = vsyncadd %s542, 0
          %s547 = scalar_lea.hbm %s1, %s39
          %s549 = sshll.u32 %s547, 4
          %s550 = int_to_ptr.hbm [resolvable:$true] %s549
          %s551 = sshll.u32 %s544, 4
          %s552 = int_to_ptr.vmem [resolvable:$true] %s551
          %554 = dma.hbm_to_vmem [thread:$0]  %s550, 16, %s552, %s542
        $region32: #{tpu_custom_call.1} parent=23 // pred_fallthru
          _
        // Predicated region
        $region33: #{tpu_custom_call.1} parent=23 // pred_check
          %p555 = pneg %p158
        $region34: #{tpu_custom_call.1} parent=23 // pred_check_branch
          %557 = sbr.rel (%p555) target = $region36
        $region35: #{tpu_custom_call.1} parent=23 // pred_region
          %p558 = scmp.lt.s32.totalorder %s40, 1
          %s559 = scalar_select %p558, %s40, 1
          %s560 = smul.addr %s559, 4
          %s561 = smul.addr %s560, 8
          %s562 = scalar_lea.vmem %s4, %s561
        $region36: #{tpu_custom_call.1} parent=23 // pred_fallthru
          _
        // Predicated region
        $region37: #{tpu_custom_call.1} parent=23 // pred_check
          %p563 = pneg %p184
        $region38: #{tpu_custom_call.1} parent=23 // pred_check_branch
          %565 = sbr.rel (%p563) target = $region40
        $region39: #{tpu_custom_call.1} parent=23 // pred_region
          %p566 = scmp.lt.s32.totalorder %s40, 1
          %s567 = scalar_select %p566, %s40, 1
          %s568 = scalar_lea.vmem %s5, %s567
        $region40: #{tpu_custom_call.1} parent=23 // pred_fallthru
          _
        // Predicated region
        $region41: #{tpu_custom_call.1} parent=23 // pred_check
          %p569 = pneg %p210
        $region42: #{tpu_custom_call.1} parent=23 // pred_check_branch
          %571 = sbr.rel (%p569) target = $region44
        $region43: #{tpu_custom_call.1} parent=23 // pred_region
          %p572 = scmp.lt.s32.totalorder %s40, 1
          %s573 = scalar_select %p572, %s40, 1
          %s574 = smul.addr %s573, 4
          %s575 = smul.addr %s574, 8
          %s576 = scalar_lea.vmem %s6, %s575
        $region44: #{tpu_custom_call.1} parent=23 // pred_fallthru
          _
        // Predicated region
        $region45: #{tpu_custom_call.1} parent=23 // pred_check
          %p577 = pneg %p236
        $region46: #{tpu_custom_call.1} parent=23 // pred_check_branch
          %579 = sbr.rel (%p577) target = $region48
        $region47: #{tpu_custom_call.1} parent=23 // pred_region
          %p580 = scmp.lt.s32.totalorder %s40, 1
          %s581 = scalar_select %p580, %s40, 1
          %s582 = scalar_lea.vmem %s7, %s581
        $region48: #{tpu_custom_call.1} parent=23 // pred_fallthru
          _
        // Predicated region
        $region49: #{tpu_custom_call.1} parent=23 // pred_check
          %p583 = pneg %p262
        $region50: #{tpu_custom_call.1} parent=23 // pred_check_branch
          %585 = sbr.rel (%p583) target = $region52
        $region51: #{tpu_custom_call.1} parent=23 // pred_region
          %s586 = sand.u32 %s32, 1
          %s587 = scalar_lea.sflag [#allocation3], %s586
          %s588 = sand.u32 %s252, 1
          %s589 = scalar_lea.vmem [#allocation10], %s588
          %591 = vsyncadd %s587, 0
          %s592 = scalar_lea.hbm %s8, %s40
          %s594 = sshll.u32 %s592, 4
          %s595 = int_to_ptr.hbm [resolvable:$true] %s594
          %s596 = sshll.u32 %s589, 4
          %s597 = int_to_ptr.vmem [resolvable:$true] %s596
          %599 = dma.hbm_to_vmem [thread:$0]  %s595, 16, %s597, %s587
        $region52: #{tpu_custom_call.1} parent=23 // pred_fallthru
          _
        // Predicated region
        $region53: #{tpu_custom_call.1} parent=23 // pred_check
          %p600 = pneg %p288
        $region54: #{tpu_custom_call.1} parent=23 // pred_check_branch
          %602 = sbr.rel (%p600) target = $region56
        $region55: #{tpu_custom_call.1} parent=23 // pred_region
          %p603 = scmp.lt.s32.totalorder %s40, 1
          %s604 = scalar_select %p603, %s40, 1
          %s605 = scalar_lea.vmem %s9, %s604
        $region56: #{tpu_custom_call.1} parent=23 // pred_fallthru
          _
        // Predicated region
        $region57: #{tpu_custom_call.1} parent=23 // pred_check
          %p606 = pneg %p314
        $region58: #{tpu_custom_call.1} parent=23 // pred_check_branch
          %608 = sbr.rel (%p606) target = $region60
        $region59: #{tpu_custom_call.1} parent=23 // pred_region
          %p609 = scmp.lt.s32.totalorder %s40, 1
          %s610 = scalar_select %p609, %s40, 1
          %s611 = smul.addr %s610, 4
          %s612 = smul.addr %s611, 8
          %s613 = scalar_lea.vmem %s10, %s612
        $region60: #{tpu_custom_call.1} parent=23 // pred_fallthru
          _
        // Predicated region
        $region61: #{tpu_custom_call.1} parent=23 // pred_check
          %p614 = pneg %p340
        $region62: #{tpu_custom_call.1} parent=23 // pred_check_branch
          %616 = sbr.rel (%p614) target = $region64
        $region63: #{tpu_custom_call.1} parent=23 // pred_region
          %p617 = scmp.lt.s32.totalorder %s40, 1
          %s618 = scalar_select %p617, %s40, 1
          %s619 = scalar_lea.vmem %s11, %s618
        $region64: #{tpu_custom_call.1} parent=23 // pred_fallthru
          _
        // Predicated region
        $region65: #{tpu_custom_call.1} parent=23 // pred_check
          %p620 = pneg %p366
        $region66: #{tpu_custom_call.1} parent=23 // pred_check_branch
          %622 = sbr.rel (%p620) target = $region68
        $region67: #{tpu_custom_call.1} parent=23 // pred_region
          %p623 = scmp.lt.s32.totalorder %s40, 1
          %s624 = scalar_select %p623, %s40, 1
          %s625 = smul.addr %s624, 8
          %s626 = smul.addr %s625, 8
          %s627 = scalar_lea.vmem %s12, %s626
        $region68: #{tpu_custom_call.1} parent=23 // pred_fallthru
          _
        // Predicated region
        $region69: #{tpu_custom_call.1} parent=23 // pred_check
          %p628 = pneg %p392
        $region70: #{tpu_custom_call.1} parent=23 // pred_check_branch
          %630 = sbr.rel (%p628) target = $region72
        $region71: #{tpu_custom_call.1} parent=23 // pred_region
          %p631 = scmp.lt.s32.totalorder %s40, 1
          %s632 = scalar_select %p631, %s40, 1
          %s633 = scalar_lea.vmem %s13, %s632
        $region72: #{tpu_custom_call.1} parent=23 // pred_fallthru
          _
        // Predicated region
        $region73: #{tpu_custom_call.1} parent=23 // pred_check
          %p634 = pneg %p418
        $region74: #{tpu_custom_call.1} parent=23 // pred_check_branch
          %636 = sbr.rel (%p634) target = $region76
        $region75: #{tpu_custom_call.1} parent=23 // pred_region
          %s637 = sand.u32 %s32, 1
          %s638 = scalar_lea.sflag [#allocation6], %s637
          %s639 = sand.u32 %s408, 1
          %s640 = scalar_lea.vmem [#allocation11], %s639
          %642 = vsyncadd %s638, 0
          %s643 = scalar_lea.hbm %s14, %s40
          %s645 = sshll.u32 %s643, 4
          %s646 = int_to_ptr.hbm [resolvable:$true] %s645
          %s647 = sshll.u32 %s640, 4
          %s648 = int_to_ptr.vmem [resolvable:$true] %s647
          %650 = dma.hbm_to_vmem [thread:$0]  %s646, 16, %s648, %s638
        $region76: #{tpu_custom_call.1} parent=23 // pred_fallthru
          _
        // Predicated region
        $region77: #{tpu_custom_call.1} parent=23 // pred_check
          %p651 = pneg %p444
        $region78: #{tpu_custom_call.1} parent=23 // pred_check_branch
          %653 = sbr.rel (%p651) target = $region80
        $region79: #{tpu_custom_call.1} parent=23 // pred_region
          %p654 = scmp.lt.s32.totalorder %s40, 1
          %s655 = scalar_select %p654, %s40, 1
          %s656 = scalar_lea.vmem %s15, %s655
        $region80: #{tpu_custom_call.1} parent=23 // pred_fallthru
          _
      $region24: #{tpu_custom_call.1} parent=5 // pred_fallthru
        _
      %p657 = scmp.le.s32.totalorder 1, %s32
      %p658 = scmp.lt.s32.totalorder %s32, 5
      %p659 = pnand %p657, %p658
      %p660 = pneg %p659
      // Predicated region
      $region81: #{tpu_custom_call.1} parent=5 // pred_check
        _
      $region82: #{tpu_custom_call.1} parent=5 // pred_check_branch
        %662 = sbr.rel (%p659) target = $region84
      $region83: #{tpu_custom_call.1} parent=5 // pred_region
        %s663 = ssub.s32 %s32, 1
        %s664 = sand.u32 %s37, 1
        %s665 = scalar_lea.sflag [#allocation3], %s664
        %s666 = sand.u32 %s57, 1
        %s667 = smul.addr %s666, 8
        %s668 = scalar_lea.vmem [#allocation2], %s667
        // Predicated region
        $region85: #{tpu_custom_call.1} parent=83 // pred_check
          %p669 = pneg %p70
        $region86: #{tpu_custom_call.1} parent=83 // pred_check_branch
          %671 = sbr.rel (%p669) target = $region88
        $region87: #{tpu_custom_call.1} parent=83 // pred_region
          %673 = dma.done %s665, 128
        $region88: #{tpu_custom_call.1} parent=83 // pred_fallthru
          _
        %s674 = sand.u32 %s37, 1
        %s675 = scalar_lea.sflag [#allocation6], %s674
        %s676 = sand.u32 %s83, 1
        %s677 = scalar_lea.vmem [#allocation5], %s676
        // Predicated region
        $region89: #{tpu_custom_call.1} parent=83 // pred_check
          %p678 = pneg %p96
        $region90: #{tpu_custom_call.1} parent=83 // pred_check_branch
          %680 = sbr.rel (%p678) target = $region92
        $region91: #{tpu_custom_call.1} parent=83 // pred_region
          %682 = dma.done %s675, 16
        $region92: #{tpu_custom_call.1} parent=83 // pred_fallthru
          _
        // Predicated region
        $region93: #{tpu_custom_call.1} parent=83 // pred_check
          %p683 = pneg %p117
        $region94: #{tpu_custom_call.1} parent=83 // pred_check_branch
          %685 = sbr.rel (%p683) target = $region96
        $region95: #{tpu_custom_call.1} parent=83 // pred_region
          %687 = dma.done [#allocation6], 16
        $region96: #{tpu_custom_call.1} parent=83 // pred_fallthru
          _
        // Predicated region
        $region97: #{tpu_custom_call.1} parent=83 // pred_check
          %p688 = pneg %p138
        $region98: #{tpu_custom_call.1} parent=83 // pred_check_branch
          %690 = sbr.rel (%p688) target = $region100
        $region99: #{tpu_custom_call.1} parent=83 // pred_region
          %692 = dma.done [#allocation9], 16
        $region100: #{tpu_custom_call.1} parent=83 // pred_fallthru
          _
        %s693 = sand.u32 %s37, 1
        %s694 = scalar_lea.sflag [#allocation3], %s693
        %s695 = sand.u32 %s255, 1
        %s696 = scalar_lea.vmem [#allocation10], %s695
        // Predicated region
        $region101: #{tpu_custom_call.1} parent=83 // pred_check
          %p697 = pneg %p268
        $region102: #{tpu_custom_call.1} parent=83 // pred_check_branch
          %699 = sbr.rel (%p697) target = $region104
        $region103: #{tpu_custom_call.1} parent=83 // pred_region
          %701 = dma.done %s694, 16
        $region104: #{tpu_custom_call.1} parent=83 // pred_fallthru
          _
        %s702 = sand.u32 %s37, 1
        %s703 = scalar_lea.sflag [#allocation6], %s702
        %s704 = sand.u32 %s411, 1
        %s705 = scalar_lea.vmem [#allocation11], %s704
        // Predicated region
        $region105: #{tpu_custom_call.1} parent=83 // pred_check
          %p706 = pneg %p424
        $region106: #{tpu_custom_call.1} parent=83 // pred_check_branch
          %708 = sbr.rel (%p706) target = $region108
        $region107: #{tpu_custom_call.1} parent=83 // pred_region
          %710 = dma.done %s703, 16
        $region108: #{tpu_custom_call.1} parent=83 // pred_fallthru
          _
        %s711 = sand.u32 %s37, 1
        %s712 = scalar_lea.sflag [#allocation3], %s711
        %s713 = sand.u32 %s57, 1
        %s714 = smul.addr %s713, 8
        %s715 = scalar_lea.vmem [#allocation2], %s714
        %p716 = pneg %p70
        %p717 = pneg %p67
        %s718 = sand.u32 %s37, 1
        %s719 = scalar_lea.sflag [#allocation6], %s718
        %s720 = sand.u32 %s83, 1
        %s721 = scalar_lea.vmem [#allocation5], %s720
        %p722 = pneg %p96
        %p723 = pneg %p93
        %p724 = pneg %p117
        %p725 = pneg %p114
        %p726 = pneg %p138
        %p727 = pneg %p135
        %p728 = scmp.lt.s32.totalorder %s42, 1
        %s729 = scalar_select %p728, %s42, 1
        %s730 = smul.addr %s729, 4
        %s731 = smul.addr %s730, 8
        %s732 = scalar_lea.vmem %s4, %s731
        %p733 = pneg %p164
        %p734 = pneg %p161
        %p735 = scmp.lt.s32.totalorder %s42, 1
        %s736 = scalar_select %p735, %s42, 1
        %s737 = scalar_lea.vmem %s5, %s736
        %p738 = pneg %p190
        %p739 = pneg %p187
        %p740 = scmp.lt.s32.totalorder %s42, 1
        %s741 = scalar_select %p740, %s42, 1
        %s742 = smul.addr %s741, 4
        %s743 = smul.addr %s742, 8
        %s744 = scalar_lea.vmem %s6, %s743
        %p745 = pneg %p216
        %p746 = pneg %p213
        %p747 = scmp.lt.s32.totalorder %s42, 1
        %s748 = scalar_select %p747, %s42, 1
        %s749 = scalar_lea.vmem %s7, %s748
        %p750 = pneg %p242
        %p751 = pneg %p239
        %s752 = sand.u32 %s37, 1
        %s753 = scalar_lea.sflag [#allocation3], %s752
        %s754 = sand.u32 %s255, 1
        %s755 = scalar_lea.vmem [#allocation10], %s754
        %p756 = pneg %p268
        %p757 = pneg %p265
        %p758 = scmp.lt.s32.totalorder %s42, 1
        %s759 = scalar_select %p758, %s42, 1
        %s760 = scalar_lea.vmem %s9, %s759
        %p761 = pneg %p294
        %p762 = pneg %p291
        %p763 = scmp.lt.s32.totalorder %s42, 1
        %s764 = scalar_select %p763, %s42, 1
        %s765 = smul.addr %s764, 4
        %s766 = smul.addr %s765, 8
        %s767 = scalar_lea.vmem %s10, %s766
        %p768 = pneg %p320
        %p769 = pneg %p317
        %p770 = scmp.lt.s32.totalorder %s42, 1
        %s771 = scalar_select %p770, %s42, 1
        %s772 = scalar_lea.vmem %s11, %s771
        %p773 = pneg %p346
        %p774 = pneg %p343
        %p775 = scmp.lt.s32.totalorder %s42, 1
        %s776 = scalar_select %p775, %s42, 1
        %s777 = smul.addr %s776, 8
        %s778 = smul.addr %s777, 8
        %s779 = scalar_lea.vmem %s12, %s778
        %p780 = pneg %p372
        %p781 = pneg %p369
        %p782 = scmp.lt.s32.totalorder %s42, 1
        %s783 = scalar_select %p782, %s42, 1
        %s784 = scalar_lea.vmem %s13, %s783
        %p785 = pneg %p398
        %p786 = pneg %p395
        %s787 = sand.u32 %s37, 1
        %s788 = scalar_lea.sflag [#allocation6], %s787
        %s789 = sand.u32 %s411, 1
        %s790 = scalar_lea.vmem [#allocation11], %s789
        %p791 = pneg %p424
        %p792 = pneg %p421
        %p793 = scmp.lt.s32.totalorder %s42, 1
        %s794 = scalar_select %p793, %s42, 1
        %s795 = scalar_lea.vmem %s15, %s794
        %p796 = pneg %p450
        %p797 = pneg %p447
        %p798 = pneg %p476
        %p799 = pneg %p473
        %s800 = sand.u32 %s463, 1
        %s801 = scalar_lea.sflag [#allocation4], %s800
        %s802 = sand.u32 %s463, 1
        %s803 = smul.addr %s802, 8
        %s804 = scalar_lea.vmem [#allocation12], %s803
        %p805 = scmp.lt.s32.totalorder %s42, 1
        %s806 = scalar_select %p805, %s42, 1
        %s807 = smul.addr %s806, 4
        %s808 = smul.addr %s807, 8
        %s809 = scalar_lea.vmem %s4, %s808
        %p810 = scmp.lt.s32.totalorder %s42, 1
        %s811 = scalar_select %p810, %s42, 1
        %s812 = scalar_lea.vmem %s5, %s811
        %p813 = scmp.lt.s32.totalorder %s42, 1
        %s814 = scalar_select %p813, %s42, 1
        %s815 = smul.addr %s814, 4
        %s816 = smul.addr %s815, 8
        %s817 = scalar_lea.vmem %s6, %s816
        %p818 = scmp.lt.s32.totalorder %s42, 1
        %s819 = scalar_select %p818, %s42, 1
        %s820 = scalar_lea.vmem %s7, %s819
        %p821 = scmp.lt.s32.totalorder %s42, 1
        %s822 = scalar_select %p821, %s42, 1
        %s823 = scalar_lea.vmem %s9, %s822
        %p824 = scmp.lt.s32.totalorder %s42, 1
        %s825 = scalar_select %p824, %s42, 1
        %s826 = smul.addr %s825, 4
        %s827 = smul.addr %s826, 8
        %s828 = scalar_lea.vmem %s10, %s827
        %p829 = scmp.lt.s32.totalorder %s42, 1
        %s830 = scalar_select %p829, %s42, 1
        %s831 = scalar_lea.vmem %s11, %s830
        %p832 = scmp.lt.s32.totalorder %s42, 1
        %s833 = scalar_select %p832, %s42, 1
        %s834 = smul.addr %s833, 8
        %s835 = smul.addr %s834, 8
        %s836 = scalar_lea.vmem %s12, %s835
        %p837 = scmp.lt.s32.totalorder %s42, 1
        %s838 = scalar_select %p837, %s42, 1
        %s839 = scalar_lea.vmem %s13, %s838
        %p840 = scmp.lt.s32.totalorder %s42, 1
        %s841 = scalar_select %p840, %s42, 1
        %s842 = scalar_lea.vmem %s15, %s841
        %p843 = scmp.eq.s32.totalorder %s42, 0
        // Predicated region
        $region109: #{tpu_custom_call.1} parent=83 // pred_check
          %p844 = pneg %p843
        $region110: #{tpu_custom_call.1} parent=83 // pred_check_branch
          %846 = sbr.rel (%p844) target = $region112
        $region111: #{tpu_custom_call.1} parent=83 // pred_region
          %v847 = vld [vmem:[%s668] sm:$0xff]
          %v848 = vld [vmem:[#allocation7] sm:$0x1]
          %v849 = vld [vmem:[#allocation8] sm:$0x1]
          %vm850 = vcmask 261120
          %v851 = vsel %vm850, %v847, 0.0
          %852 = vadd.xlane.f32.xlu0 %v851
          %v853 = vpop.xlane.xlu0 %852
          %v854 = vrcp.pop 32.0
          %v855 = vmul.f32 32.0, %v854
          %v856 = vsub.f32 1.0, %v855
          %v857 = vmul.f32 %v854, %v856
          %v858 = vadd.f32 %v854, %v857
          %vm859 = vweird.f32 %v854
          %v860 = vsel %vm859, %v854, %v858
          %v861 = vmul.f32 %v853, %v860
          %v862 = vsub.f32 %v847, %v861
          %v863 = vmul.f32 %v862, %v862
          %v864 = vsel %vm850, %v863, 0.0
          %865 = vadd.xlane.f32.xlu0 %v864
          %v866 = vpop.xlane.xlu0 %865
          %v867 = vmul.f32 %v866, %v860
          %v868 = vadd.f32 %v867, 1e-12
          %v869 = vrsqrt.pop %v868
          %v870 = vmul.f32 %v869, %v868
          %v871 = vmul.f32 %v870, %v869
          %v872 = vmul.f32 0.5, %v871
          %v873 = vsub.f32 1.5, %v872
          %v874 = vmul.f32 %v869, %v873
          %vm875 = vweird.f32 %v868
          %vm876 = vweird.f32 %v869
          %vm877 = vmor %vm875, %vm876
          %v878 = vsel %vm877, %v869, %v874
          %v879 = vmul.f32 %v862, %v878
          %v881 = vperm.slane %v848, 0
          %v883 = vmul.f32 %v879, %v881
          %v885 = vperm.slane %v849, 0
          %v887 = vadd.f32 %v883, %v885
          %888 = vst.msk [vmem:[%s804] sm:$0xff] %vm850, %v887
        $region112: #{tpu_custom_call.1} parent=83 // pred_fallthru
          _
        %v889 = vld [vmem:[%s804] sm:$0xff]
        %v890 = vld [vmem:[%s809] sm:$0xff]
        %v891 = vld [vmem:[%s809 + $0x8] sm:$0xff]
        %v892 = vld [vmem:[%s809 + $0x10] sm:$0xff]
        %v893 = vld [vmem:[%s809 + $0x18] sm:$0xff]
        %v894 = vld [vmem:[%s812] sm:$0x1]
        %v896 = vperm.slane %v894, 0
        %vm898 = vcmask 261120
        %v900 = vsel %vm898, %v889, 0
        %902 = vmatpush.msra.mxu0 0.0
        %903 = vmatpush.msra.mxu0 0.0
        %904 = vmatpush.msra.mxu0 0.0
        %905 = vmatpush.msra.mxu0 0.0
        %906 = vmatpush.msra.mxu0 0.0
        %907 = vmatpush.msra.mxu0 0.0
        %908 = vmatpush.msra.mxu0 0.0
        %909 = vmatpush.msra.mxu0 0.0
        %910 = vmatpush.msra.mxu0 0.0
        %911 = vmatpush.msra.mxu0 0.0
        %912 = vmatpush.msra.mxu0 0.0
        %913 = vmatpush.msra.mxu0 0.0
        %914 = vmatpush.msra.mxu0 %v893
        %915 = vmatpush.msra.mxu0 %v892
        %916 = vmatpush.msra.mxu0 %v891
        %917 = vmatpush.msra.mxu0 %v890
        %918 = vmatmul.f32.gmra.mxu0 %v900
        %v919 = vpop.f32.mrf.mxu0
        %v920 = vadd.f32 %v896, %v919
        %921 = vdwg.mxu0
        %v922 = vmul.f32 %v920, 0.35355338
        %v923 = vld [vmem:[%s677] sm:$0x1]
        %v925 = vperm.slane %v923, 0
        %928 = vrot.lane.b32.xlu0 %v920, 96
        %v929 = vpop.permute.xlu0 %928
        %vm930 = vcmask 64512
        %v932 = vsel %vm930, %v922, 0
        %v934 = vsel %vm930, %v929, 0
        %936 = vmatpush.xpose.msra.mxu0 0.0
        %937 = vmatpush.xpose.msra.mxu0 0.0
        %938 = vmatpush.xpose.msra.mxu0 0.0
        %939 = vmatpush.xpose.msra.mxu0 0.0
        %940 = vmatpush.xpose.msra.mxu0 0.0
        %941 = vmatpush.xpose.msra.mxu0 0.0
        %942 = vmatpush.xpose.msra.mxu0 0.0
        %943 = vmatpush.xpose.msra.mxu0 0.0
        %944 = vmatpush.xpose.msra.mxu0 0.0
        %945 = vmatpush.xpose.msra.mxu0 0.0
        %946 = vmatpush.xpose.msra.mxu0 0.0
        %947 = vmatpush.xpose.msra.mxu0 0.0
        %948 = vmatpush.xpose.msra.mxu0 0.0
        %949 = vmatpush.xpose.msra.mxu0 0.0
        %950 = vmatpush.xpose.msra.mxu0 0.0
        %951 = vmatpush.xpose.msra.mxu0 %v934
        %952 = vmatmul.f32.gmra.mxu0 %v932
        %v953 = vpop.f32.mrf.mxu0
        %v954 = vadd.f32 %v925, %v953
        %955 = vdwg.mxu0
        %v956 = vsel %vm930, %v954, -inf
        %957 = vmax.xlane.f32.xlu0 %v956
        %v958 = vpop.xlane.xlu0 %957
        %v959 = vsub.f32 %v954, %v958
        %v960 = vmul.f32 %v959, 1.442695
        %v961 = vpow.pop %v960
        %v962 = vsel %vm930, %v961, 0.0
        %963 = vadd.xlane.f32.xlu0 %v962
        %v964 = vpop.xlane.xlu0 %963
        %v965 = vrcp.pop %v964
        %v966 = vmul.f32 %v961, %v965
        %967 = vrot.lane.b32.xlu0 %v920, 64
        %v968 = vpop.permute.xlu0 %967
        %v971 = vsel %vm930, %v966, 0
        %973 = vmatpush.msra.mxu0 0.0
        %974 = vmatpush.msra.mxu0 0.0
        %975 = vmatpush.msra.mxu0 0.0
        %976 = vmatpush.msra.mxu0 0.0
        %977 = vmatpush.msra.mxu0 0.0
        %978 = vmatpush.msra.mxu0 0.0
        %979 = vmatpush.msra.mxu0 0.0
        %980 = vmatpush.msra.mxu0 0.0
        %981 = vmatpush.msra.mxu0 0.0
        %982 = vmatpush.msra.mxu0 0.0
        %983 = vmatpush.msra.mxu0 0.0
        %984 = vmatpush.msra.mxu0 0.0
        %985 = vmatpush.msra.mxu0 0.0
        %986 = vmatpush.msra.mxu0 0.0
        %987 = vmatpush.msra.mxu0 0.0
        %988 = vmatpush.msra.mxu0 %v968
        %989 = vmatmul.f32.gmra.mxu0 %v971
        %v990 = vpop.f32.mrf.mxu0
        %v991 = vadd.f32 0.0, %v990
        %992 = vdwg.mxu0
        %993 = vrot.lane.b32.xlu0 %v922, 120
        %v994 = vpop.permute.xlu0 %993
        %995 = vrot.lane.b32.xlu0 %v920, 88
        %v996 = vpop.permute.xlu0 %995
        %v997 = vsel %vm930, %v994, 0
        %v999 = vsel %vm930, %v996, 0
        %1001 = vmatpush.xpose.msra.mxu0 0.0
        %1002 = vmatpush.xpose.msra.mxu0 0.0
        %1003 = vmatpush.xpose.msra.mxu0 0.0
        %1004 = vmatpush.xpose.msra.mxu0 0.0
        %1005 = vmatpush.xpose.msra.mxu0 0.0
        %1006 = vmatpush.xpose.msra.mxu0 0.0
        %1007 = vmatpush.xpose.msra.mxu0 0.0
        %1008 = vmatpush.xpose.msra.mxu0 0.0
        %1009 = vmatpush.xpose.msra.mxu0 0.0
        %1010 = vmatpush.xpose.msra.mxu0 0.0
        %1011 = vmatpush.xpose.msra.mxu0 0.0
        %1012 = vmatpush.xpose.msra.mxu0 0.0
        %1013 = vmatpush.xpose.msra.mxu0 0.0
        %1014 = vmatpush.xpose.msra.mxu0 0.0
        %1015 = vmatpush.xpose.msra.mxu0 0.0
        %1016 = vmatpush.xpose.msra.mxu0 %v999
        %1017 = vmatmul.f32.gmra.mxu0 %v997
        %v1018 = vpop.f32.mrf.mxu0
        %v1019 = vadd.f32 %v925, %v1018
        %1020 = vdwg.mxu0
        %v1021 = vsel %vm930, %v1019, -inf
        %1022 = vmax.xlane.f32.xlu0 %v1021
        %v1023 = vpop.xlane.xlu0 %1022
        %v1024 = vsub.f32 %v1019, %v1023
        %v1025 = vmul.f32 %v1024, 1.442695
        %v1026 = vpow.pop %v1025
        %v1027 = vsel %vm930, %v1026, 0.0
        %1028 = vadd.xlane.f32.xlu0 %v1027
        %v1029 = vpop.xlane.xlu0 %1028
        %v1030 = vrcp.pop %v1029
        %v1031 = vmul.f32 %v1026, %v1030
        %1032 = vrot.lane.b32.xlu0 %v920, 56
        %v1033 = vpop.permute.xlu0 %1032
        %v1036 = vsel %vm930, %v1031, 0
        %1038 = vmatpush.msra.mxu0 0.0
        %1039 = vmatpush.msra.mxu0 0.0
        %1040 = vmatpush.msra.mxu0 0.0
        %1041 = vmatpush.msra.mxu0 0.0
        %1042 = vmatpush.msra.mxu0 0.0
        %1043 = vmatpush.msra.mxu0 0.0
        %1044 = vmatpush.msra.mxu0 0.0
        %1045 = vmatpush.msra.mxu0 0.0
        %1046 = vmatpush.msra.mxu0 0.0
        %1047 = vmatpush.msra.mxu0 0.0
        %1048 = vmatpush.msra.mxu0 0.0
        %1049 = vmatpush.msra.mxu0 0.0
        %1050 = vmatpush.msra.mxu0 0.0
        %1051 = vmatpush.msra.mxu0 0.0
        %1052 = vmatpush.msra.mxu0 0.0
        %1053 = vmatpush.msra.mxu0 %v1033
        %1054 = vmatmul.f32.gmra.mxu0 %v1036
        %v1055 = vpop.f32.mrf.mxu0
        %v1056 = vadd.f32 0.0, %v1055
        %1057 = vdwg.mxu0
        %1058 = vrot.lane.b32.xlu0 %v922, 112
        %v1059 = vpop.permute.xlu0 %1058
        %1060 = vrot.lane.b32.xlu0 %v920, 80
        %v1061 = vpop.permute.xlu0 %1060
        %v1062 = vsel %vm930, %v1059, 0
        %v1064 = vsel %vm930, %v1061, 0
        %1066 = vmatpush.xpose.msra.mxu0 0.0
        %1067 = vmatpush.xpose.msra.mxu0 0.0
        %1068 = vmatpush.xpose.msra.mxu0 0.0
        %1069 = vmatpush.xpose.msra.mxu0 0.0
        %1070 = vmatpush.xpose.msra.mxu0 0.0
        %1071 = vmatpush.xpose.msra.mxu0 0.0
        %1072 = vmatpush.xpose.msra.mxu0 0.0
        %1073 = vmatpush.xpose.msra.mxu0 0.0
        %1074 = vmatpush.xpose.msra.mxu0 0.0
        %1075 = vmatpush.xpose.msra.mxu0 0.0
        %1076 = vmatpush.xpose.msra.mxu0 0.0
        %1077 = vmatpush.xpose.msra.mxu0 0.0
        %1078 = vmatpush.xpose.msra.mxu0 0.0
        %1079 = vmatpush.xpose.msra.mxu0 0.0
        %1080 = vmatpush.xpose.msra.mxu0 0.0
        %1081 = vmatpush.xpose.msra.mxu0 %v1064
        %1082 = vmatmul.f32.gmra.mxu0 %v1062
        %v1083 = vpop.f32.mrf.mxu0
        %v1084 = vadd.f32 %v925, %v1083
        %1085 = vdwg.mxu0
        %v1086 = vsel %vm930, %v1084, -inf
        %1087 = vmax.xlane.f32.xlu0 %v1086
        %v1088 = vpop.xlane.xlu0 %1087
        %v1089 = vsub.f32 %v1084, %v1088
        %v1090 = vmul.f32 %v1089, 1.442695
        %v1091 = vpow.pop %v1090
        %v1092 = vsel %vm930, %v1091, 0.0
        %1093 = vadd.xlane.f32.xlu0 %v1092
        %v1094 = vpop.xlane.xlu0 %1093
        %v1095 = vrcp.pop %v1094
        %v1096 = vmul.f32 %v1091, %v1095
        %1097 = vrot.lane.b32.xlu0 %v920, 48
        %v1098 = vpop.permute.xlu0 %1097
        %v1101 = vsel %vm930, %v1096, 0
        %1103 = vmatpush.msra.mxu0 0.0
        %1104 = vmatpush.msra.mxu0 0.0
        %1105 = vmatpush.msra.mxu0 0.0
        %1106 = vmatpush.msra.mxu0 0.0
        %1107 = vmatpush.msra.mxu0 0.0
        %1108 = vmatpush.msra.mxu0 0.0
        %1109 = vmatpush.msra.mxu0 0.0
        %1110 = vmatpush.msra.mxu0 0.0
        %1111 = vmatpush.msra.mxu0 0.0
        %1112 = vmatpush.msra.mxu0 0.0
        %1113 = vmatpush.msra.mxu0 0.0
        %1114 = vmatpush.msra.mxu0 0.0
        %1115 = vmatpush.msra.mxu0 0.0
        %1116 = vmatpush.msra.mxu0 0.0
        %1117 = vmatpush.msra.mxu0 0.0
        %1118 = vmatpush.msra.mxu0 %v1098
        %1119 = vmatmul.f32.gmra.mxu0 %v1101
        %v1120 = vpop.f32.mrf.mxu0
        %v1121 = vadd.f32 0.0, %v1120
        %1122 = vdwg.mxu0
        %1123 = vrot.lane.b32.xlu0 %v922, 104
        %v1124 = vpop.permute.xlu0 %1123
        %1125 = vrot.lane.b32.xlu0 %v920, 72
        %v1126 = vpop.permute.xlu0 %1125
        %v1127 = vsel %vm930, %v1124, 0
        %v1129 = vsel %vm930, %v1126, 0
        %1131 = vmatpush.xpose.msra.mxu0 0.0
        %1132 = vmatpush.xpose.msra.mxu0 0.0
        %1133 = vmatpush.xpose.msra.mxu0 0.0
        %1134 = vmatpush.xpose.msra.mxu0 0.0
        %1135 = vmatpush.xpose.msra.mxu0 0.0
        %1136 = vmatpush.xpose.msra.mxu0 0.0
        %1137 = vmatpush.xpose.msra.mxu0 0.0
        %1138 = vmatpush.xpose.msra.mxu0 0.0
        %1139 = vmatpush.xpose.msra.mxu0 0.0
        %1140 = vmatpush.xpose.msra.mxu0 0.0
        %1141 = vmatpush.xpose.msra.mxu0 0.0
        %1142 = vmatpush.xpose.msra.mxu0 0.0
        %1143 = vmatpush.xpose.msra.mxu0 0.0
        %1144 = vmatpush.xpose.msra.mxu0 0.0
        %1145 = vmatpush.xpose.msra.mxu0 0.0
        %1146 = vmatpush.xpose.msra.mxu0 %v1129
        %1147 = vmatmul.f32.gmra.mxu0 %v1127
        %v1148 = vpop.f32.mrf.mxu0
        %v1149 = vadd.f32 %v925, %v1148
        %1150 = vdwg.mxu0
        %v1151 = vsel %vm930, %v1149, -inf
        %1152 = vmax.xlane.f32.xlu0 %v1151
        %v1153 = vpop.xlane.xlu0 %1152
        %v1154 = vsub.f32 %v1149, %v1153
        %v1155 = vmul.f32 %v1154, 1.442695
        %v1156 = vpow.pop %v1155
        %v1157 = vsel %vm930, %v1156, 0.0
        %1158 = vadd.xlane.f32.xlu0 %v1157
        %v1159 = vpop.xlane.xlu0 %1158
        %v1160 = vrcp.pop %v1159
        %v1161 = vmul.f32 %v1156, %v1160
        %1162 = vrot.lane.b32.xlu0 %v920, 40
        %v1163 = vpop.permute.xlu0 %1162
        %v1166 = vsel %vm930, %v1161, 0
        %1168 = vmatpush.msra.mxu0 0.0
        %1169 = vmatpush.msra.mxu0 0.0
        %1170 = vmatpush.msra.mxu0 0.0
        %1171 = vmatpush.msra.mxu0 0.0
        %1172 = vmatpush.msra.mxu0 0.0
        %1173 = vmatpush.msra.mxu0 0.0
        %1174 = vmatpush.msra.mxu0 0.0
        %1175 = vmatpush.msra.mxu0 0.0
        %1176 = vmatpush.msra.mxu0 0.0
        %1177 = vmatpush.msra.mxu0 0.0
        %1178 = vmatpush.msra.mxu0 0.0
        %1179 = vmatpush.msra.mxu0 0.0
        %1180 = vmatpush.msra.mxu0 0.0
        %1181 = vmatpush.msra.mxu0 0.0
        %1182 = vmatpush.msra.mxu0 0.0
        %1183 = vmatpush.msra.mxu0 %v1163
        %1184 = vmatmul.f32.gmra.mxu0 %v1166
        %v1185 = vpop.f32.mrf.mxu0
        %v1186 = vadd.f32 0.0, %v1185
        %1187 = vdwg.mxu0
        %1189 = vrot.lane.b32.xlu0 %v1056, 8
        %v1190 = vpop.permute.xlu0 %1189
        %1193 = vrot.lane.b32.xlu0 %v1121, 16
        %v1194 = vpop.permute.xlu0 %1193
        %1197 = vrot.lane.b32.xlu0 %v1186, 24
        %v1198 = vpop.permute.xlu0 %1197
        %v1200 = vsel %vm930, %v991, %v1190
        %vm1201 = vcmask 130048
        %v1202 = vsel %vm1201, %v1200, %v1194
        %vm1203 = vcmask 195584
        %v1204 = vsel %vm1203, %v1202, %v1198
        %v1205 = vld [vmem:[%s817] sm:$0xff]
        %v1206 = vld [vmem:[%s817 + $0x8] sm:$0xff]
        %v1207 = vld [vmem:[%s817 + $0x10] sm:$0xff]
        %v1208 = vld [vmem:[%s817 + $0x18] sm:$0xff]
        %v1209 = vld [vmem:[%s820] sm:$0x1]
        %v1211 = vperm.slane %v1209, 0
        %v1214 = vsel %vm898, %v1204, 0
        %1216 = vmatpush.msra.mxu0 0.0
        %1217 = vmatpush.msra.mxu0 0.0
        %1218 = vmatpush.msra.mxu0 0.0
        %1219 = vmatpush.msra.mxu0 0.0
        %1220 = vmatpush.msra.mxu0 0.0
        %1221 = vmatpush.msra.mxu0 0.0
        %1222 = vmatpush.msra.mxu0 0.0
        %1223 = vmatpush.msra.mxu0 0.0
        %1224 = vmatpush.msra.mxu0 0.0
        %1225 = vmatpush.msra.mxu0 0.0
        %1226 = vmatpush.msra.mxu0 0.0
        %1227 = vmatpush.msra.mxu0 0.0
        %1228 = vmatpush.msra.mxu0 %v1208
        %1229 = vmatpush.msra.mxu0 %v1207
        %1230 = vmatpush.msra.mxu0 %v1206
        %1231 = vmatpush.msra.mxu0 %v1205
        %1232 = vmatmul.f32.gmra.mxu0 %v1214
        %v1233 = vpop.f32.mrf.mxu0
        %v1234 = vadd.f32 %v1211, %v1233
        %1235 = vdwg.mxu0
        %v1236 = vadd.f32 %v1234, %v889
        %v1237 = vld [vmem:[%s696] sm:$0x1]
        %v1238 = vld [vmem:[%s823] sm:$0x1]
        %v1239 = vsel %vm898, %v1236, 0.0
        %1240 = vadd.xlane.f32.xlu0 %v1239
        %v1241 = vpop.xlane.xlu0 %1240
        %v1242 = vrcp.pop 32.0
        %v1243 = vmul.f32 32.0, %v1242
        %v1244 = vsub.f32 1.0, %v1243
        %v1245 = vmul.f32 %v1242, %v1244
        %v1246 = vadd.f32 %v1242, %v1245
        %vm1247 = vweird.f32 %v1242
        %v1248 = vsel %vm1247, %v1242, %v1246
        %v1249 = vmul.f32 %v1241, %v1248
        %v1250 = vsub.f32 %v1236, %v1249
        %v1251 = vmul.f32 %v1250, %v1250
        %v1252 = vsel %vm898, %v1251, 0.0
        %1253 = vadd.xlane.f32.xlu0 %v1252
        %v1254 = vpop.xlane.xlu0 %1253
        %v1255 = vmul.f32 %v1254, %v1248
        %v1256 = vadd.f32 %v1255, 1e-12
        %v1257 = vrsqrt.pop %v1256
        %v1258 = vmul.f32 %v1257, %v1256
        %v1259 = vmul.f32 %v1258, %v1257
        %v1260 = vmul.f32 0.5, %v1259
        %v1261 = vsub.f32 1.5, %v1260
        %v1262 = vmul.f32 %v1257, %v1261
        %vm1263 = vweird.f32 %v1256
        %vm1264 = vweird.f32 %v1257
        %vm1265 = vmor %vm1263, %vm1264
        %v1266 = vsel %vm1265, %v1257, %v1262
        %v1267 = vmul.f32 %v1250, %v1266
        %v1269 = vperm.slane %v1237, 0
        %v1271 = vmul.f32 %v1267, %v1269
        %v1273 = vperm.slane %v1238, 0
        %v1275 = vadd.f32 %v1271, %v1273
        %v1276 = vld [vmem:[%s828] sm:$0xff]
        %v1277 = vld [vmem:[%s828 + $0x8] sm:$0xff]
        %v1278 = vld [vmem:[%s828 + $0x10] sm:$0xff]
        %v1279 = vld [vmem:[%s828 + $0x18] sm:$0xff]
        %v1280 = vld [vmem:[%s831] sm:$0x1]
        %v1282 = vperm.slane %v1280, 0
        %v1285 = vsel %vm898, %v1275, 0
        %1287 = vmatpush.msra.mxu0 0.0
        %1288 = vmatpush.msra.mxu0 0.0
        %1289 = vmatpush.msra.mxu0 0.0
        %1290 = vmatpush.msra.mxu0 0.0
        %1291 = vmatpush.msra.mxu0 0.0
        %1292 = vmatpush.msra.mxu0 0.0
        %1293 = vmatpush.msra.mxu0 0.0
        %1294 = vmatpush.msra.mxu0 0.0
        %1295 = vmatpush.msra.mxu0 0.0
        %1296 = vmatpush.msra.mxu0 0.0
        %1297 = vmatpush.msra.mxu0 0.0
        %1298 = vmatpush.msra.mxu0 0.0
        %1299 = vmatpush.msra.mxu0 %v1279
        %1300 = vmatpush.msra.mxu0 %v1278
        %1301 = vmatpush.msra.mxu0 %v1277
        %1302 = vmatpush.msra.mxu0 %v1276
        %1303 = vmatmul.f32.gmra.mxu0 %v1285
        %v1304 = vpop.f32.mrf.mxu0
        %v1305 = vadd.f32 %v1282, %v1304
        %1306 = vdwg.mxu0
        %v1307 = vmul.f32 %v1305, 0.5
        %v1308 = vmul.f32 %v1305, 0.044715
        %v1309 = vmul.f32 %v1308, %v1305
        %v1310 = vmul.f32 %v1309, %v1305
        %v1311 = vadd.f32 %v1305, %v1310
        %v1312 = vmul.f32 %v1311, 0.7978846
        %v1313 = vtanh.pop %v1312
        %v1314 = vadd.f32 %v1313, 1.0
        %v1315 = vmul.f32 %v1307, %v1314
        %v1316 = vld [vmem:[%s836] sm:$0xff]
        %v1317 = vld [vmem:[%s836 + $0x8] sm:$0xff]
        %v1318 = vld [vmem:[%s836 + $0x10] sm:$0xff]
        %v1319 = vld [vmem:[%s836 + $0x18] sm:$0xff]
        %v1320 = vld [vmem:[%s836 + $0x20] sm:$0xff]
        %v1321 = vld [vmem:[%s836 + $0x28] sm:$0xff]
        %v1322 = vld [vmem:[%s836 + $0x30] sm:$0xff]
        %v1323 = vld [vmem:[%s836 + $0x38] sm:$0xff]
        %v1324 = vld [vmem:[%s839] sm:$0x1]
        %v1326 = vperm.slane %v1324, 0
        %vm1328 = vcmask 523264
        %v1330 = vsel %vm1328, %v1315, 0
        %1332 = vmatpush.msra.mxu0 0.0
        %1333 = vmatpush.msra.mxu0 0.0
        %1334 = vmatpush.msra.mxu0 0.0
        %1335 = vmatpush.msra.mxu0 0.0
        %1336 = vmatpush.msra.mxu0 0.0
        %1337 = vmatpush.msra.mxu0 0.0
        %1338 = vmatpush.msra.mxu0 0.0
        %1339 = vmatpush.msra.mxu0 0.0
        %1340 = vmatpush.msra.mxu0 %v1323
        %1341 = vmatpush.msra.mxu0 %v1322
        %1342 = vmatpush.msra.mxu0 %v1321
        %1343 = vmatpush.msra.mxu0 %v1320
        %1344 = vmatpush.msra.mxu0 %v1319
        %1345 = vmatpush.msra.mxu0 %v1318
        %1346 = vmatpush.msra.mxu0 %v1317
        %1347 = vmatpush.msra.mxu0 %v1316
        %1348 = vmatmul.f32.gmra.mxu0 %v1330
        %v1349 = vpop.f32.mrf.mxu0
        %v1350 = vadd.f32 %v1326, %v1349
        %1351 = vdwg.mxu0
        %v1352 = vadd.f32 %v1350, %v1275
        %v1353 = vld [vmem:[%s705] sm:$0x1]
        %v1354 = vld [vmem:[%s842] sm:$0x1]
        %v1355 = vsel %vm898, %v1352, 0.0
        %1356 = vadd.xlane.f32.xlu0 %v1355
        %v1357 = vpop.xlane.xlu0 %1356
        %v1358 = vmul.f32 %v1357, %v1248
        %v1359 = vsub.f32 %v1352, %v1358
        %v1360 = vmul.f32 %v1359, %v1359
        %v1361 = vsel %vm898, %v1360, 0.0
        %1362 = vadd.xlane.f32.xlu0 %v1361
        %v1363 = vpop.xlane.xlu0 %1362
        %v1364 = vmul.f32 %v1363, %v1248
        %v1365 = vadd.f32 %v1364, 1e-12
        %v1366 = vrsqrt.pop %v1365
        %v1367 = vmul.f32 %v1366, %v1365
        %v1368 = vmul.f32 %v1367, %v1366
        %v1369 = vmul.f32 0.5, %v1368
        %v1370 = vsub.f32 1.5, %v1369
        %v1371 = vmul.f32 %v1366, %v1370
        %vm1372 = vweird.f32 %v1365
        %vm1373 = vweird.f32 %v1366
        %vm1374 = vmor %vm1372, %vm1373
        %v1375 = vsel %vm1374, %v1366, %v1371
        %v1376 = vmul.f32 %v1359, %v1375
        %v1378 = vperm.slane %v1353, 0
        %v1380 = vmul.f32 %v1376, %v1378
        %v1382 = vperm.slane %v1354, 0
        %v1384 = vadd.f32 %v1380, %v1382
        %1385 = vst.msk [vmem:[%s804] sm:$0xff] %vm898, %v1384
        %s1386 = sand.u32 %s463, 1
        %s1387 = scalar_lea.sflag [#allocation4], %s1386
        %s1388 = sand.u32 %s463, 1
        %s1389 = smul.addr %s1388, 8
        %s1390 = scalar_lea.vmem [#allocation12], %s1389
        // Predicated region
        $region113: #{tpu_custom_call.1} parent=83 // pred_check
          %p1391 = pneg %p473
        $region114: #{tpu_custom_call.1} parent=83 // pred_check_branch
          %1393 = sbr.rel (%p1391) target = $region116
        $region115: #{tpu_custom_call.1} parent=83 // pred_region
          %1395 = vsyncadd %s1387, 0
          %s1396 = smul.addr %s41, 8
          %s1397 = scalar_lea.hbm %s16, %s1396
          %s1399 = sshll.u32 %s1390, 4
          %s1400 = int_to_ptr.vmem [resolvable:$true] %s1399
          %s1401 = sshll.u32 %s1397, 4
          %s1402 = int_to_ptr.hbm [resolvable:$true] %s1401
          %1404 = dma.vmem_to_hbm [thread:$0]  %s1400, 128, %s1402, %s1387
        $region116: #{tpu_custom_call.1} parent=83 // pred_fallthru
          _
      $region84: #{tpu_custom_call.1} parent=5 // pred_fallthru
        _
      %p1405 = scmp.le.s32.totalorder 2, %s32
      // Predicated region
      $region117: #{tpu_custom_call.1} parent=5 // pred_check
        %p1406 = pneg %p1405
      $region118: #{tpu_custom_call.1} parent=5 // pred_check_branch
        %1408 = sbr.rel (%p1406) target = $region120
      $region119: #{tpu_custom_call.1} parent=5 // pred_region
        %s1409 = ssub.s32 %s32, 2
        // Predicated region
        $region121: #{tpu_custom_call.1} parent=119 // pred_check
          %p1410 = pneg %p479
        $region122: #{tpu_custom_call.1} parent=119 // pred_check_branch
          %1412 = sbr.rel (%p1410) target = $region124
        $region123: #{tpu_custom_call.1} parent=119 // pred_region
          %s1413 = sand.u32 %s464, 1
          %s1414 = scalar_lea.sflag [#allocation4], %s1413
          %s1415 = sand.u32 %s464, 1
          %s1416 = smul.addr %s1415, 8
          %s1417 = scalar_lea.vmem [#allocation12], %s1416
          %1419 = dma.done %s1414, 128
        $region124: #{tpu_custom_call.1} parent=119 // pred_fallthru
          _
      $region120: #{tpu_custom_call.1} parent=5 // pred_fallthru
        _
    $region6: #{tpu_custom_call.1} parent=1 // loop_footer
      %s36 = sadd.s32 1, %s32
    $region7: #{tpu_custom_call.1} parent=1 // loop_footer_branch
      %31 = sbr.rel target = $region3
    $region8: #{tpu_custom_call.1} parent=1 // loop_exit
      _
    %1420 = vsyncpa [#allocation3], 1
    %s1421 = scalar_lea.sflag [#allocation3], 1
    %1422 = vsyncpa %s1421, 1
    %1423 = vsyncpa [#allocation6], 1
    %s1424 = scalar_lea.sflag [#allocation6], 1
    %1425 = vsyncpa %s1424, 1
    %1426 = vsyncpa [#allocation9], 1
    %1427 = vsyncpa [#allocation4], 1
    %s1428 = scalar_lea.sflag [#allocation4], 1
    %1429 = vsyncpa %s1428, 1

</llo_original>
